<compile_context>
chip_gen: v7x
topology: tpu7x:2x2x1
jax: 0.10.0
libtpu: 0.0.40
codegen_flags: <defaults>
</compile_context>

<pallas_src>
import functools
import math

import jax
import jax.numpy as jnp
from jax.experimental import pallas as pl
from jax.experimental.pallas import tpu as pltpu

LANE = 128
SUBLANE = 8
_MIB = 1024 * 1024


def _round_up(v, m):
    return ((v + m - 1) // m) * m


def _pad2d(a, rows, cols):
    pr, pc = rows - a.shape[0], cols - a.shape[1]
    if pr or pc:
        a = jnp.pad(a, ((0, pr), (0, pc)))
    return a


def _choose_tiles(n, tm, tk):
    """Clamp requested tiles to the 128-padded problem size; pick n_pad divisible by both."""
    n128 = _round_up(n, LANE)
    tm = _round_up(min(tm, n128), LANE)
    tk = _round_up(min(tk, n128), LANE)
    n_pad = _round_up(n, math.lcm(tm, tk))
    return tm, tk, n_pad


def gcn_conv_kernel(flags_ref, adj_ref, x_ref, wt_ref, b_ref, o_ref, acc_ref, *,
                    activation, l2_normalize):
    k = pl.program_id(1)
    nk = pl.num_programs(1)

    @pl.when(k == 0)
    def _init():
        acc_ref[...] = jnp.zeros_like(acc_ref)

    # Block-sparse skip: all-zero adjacency tiles contribute exactly zero.
    @pl.when(flags_ref[pl.program_id(0) * nk + k] != 0)
    def _accumulate():
        acc_ref[...] += jnp.dot(adj_ref[...], x_ref[...],
                                preferred_element_type=jnp.float32)

    @pl.when(k == nk - 1)
    def _epilogue():
        out = jnp.dot(acc_ref[...].astype(wt_ref.dtype), wt_ref[...],
                      preferred_element_type=jnp.float32) + b_ref[...]
        if activation == "relu":
            out = jnp.maximum(out, 0.0)
        elif activation == "tanh":
            out = jnp.tanh(out)
        if l2_normalize:
            # F.normalize: x / max(||x||_2, 1e-12).  Padded cols are exact zeros,
            # so they do not perturb the norm.  rsqrt -> EUP slot (free-ish).
            sumsq = jnp.sum(out * out, axis=-1, keepdims=True)
            out = out * jax.lax.rsqrt(jnp.maximum(sumsq, 1e-24))
        o_ref[...] = out.astype(o_ref.dtype)


def gcn_conv_layer(adj_p, x_p, flags, weight, bias, *, tm, tk,
                   activation=None, l2_normalize=False):
    """One GCNConv layer on pre-padded inputs.

    adj_p:  [n_pad, n_pad]     bf16 zero-padded normalized adjacency
    x_p:    [n_pad, c_in_pad]  bf16 zero-padded node features (padded cols == 0)
    flags:  [(n_pad//tm)*(n_pad//tk)] int32 per-tile nonzero flags for adj_p
    weight: [c_out, c_in]      torch Linear layout
    bias:   [c_out] or None
    Returns padded output [n_pad, c_out_pad]; bf16 for hidden layers, f32 for the
    final (L2-normalized) layer.
    """
    n_pad = adj_p.shape[0]
    c_out, c_in = weight.shape
    c_in_pad = x_p.shape[1]
    c_out_pad = _round_up(c_out, LANE)

    wt_p = _pad2d(weight.T.astype(jnp.float32), c_in_pad, c_out_pad).astype(jnp.bfloat16)
    if bias is None:
        b_p = jnp.zeros((1, c_out_pad), jnp.float32)
    else:
        b_p = _pad2d(bias.reshape(1, c_out).astype(jnp.float32), 1, c_out_pad)

    out_dtype = jnp.float32 if l2_normalize else jnp.bfloat16
    out_bytes = jnp.dtype(out_dtype).itemsize
    grid = (n_pad // tm, n_pad // tk)

    # Advisory cost estimate (dense upper bound on the sparse aggregation).
    flops = 2 * n_pad * n_pad * c_in_pad + 2 * n_pad * c_in_pad * c_out_pad
    bytes_accessed = int(2 * n_pad * n_pad + 2 * n_pad * c_in_pad
                         + 2 * c_in_pad * c_out_pad + 4 * c_out_pad
                         + out_bytes * n_pad * c_out_pad)
    transcendentals = n_pad * c_out_pad if activation == "tanh" else 0
    if l2_normalize:
        transcendentals += n_pad

    # VMEM: double-buffered blocks + f32 accumulator, 2x headroom; the K-tiled blocks
    # are small (O(tm*tk)), so a 32-44 MiB limit is safe on v5e/v6e/v7x alike.
    est_vmem = (2 * tm * tk * 2 + 2 * tk * c_in_pad * 2 + 2 * c_in_pad * c_out_pad * 2
                + 2 * c_out_pad * 4 + 2 * tm * c_out_pad * out_bytes
                + tm * c_in_pad * 4)
    vmem_limit = int(min(max(2 * est_vmem, 32 * _MIB), 44 * _MIB))

    kernel = functools.partial(gcn_conv_kernel,
                               activation=activation, l2_normalize=l2_normalize)

    return pl.pallas_call(
        kernel,
        out_shape=jax.ShapeDtypeStruct((n_pad, c_out_pad), out_dtype),
        grid_spec=pltpu.PrefetchScalarGridSpec(
            num_scalar_prefetch=1,
            grid=grid,
            in_specs=[
                pl.BlockSpec((tm, tk), lambda i, k, flags: (i, k)),            # adj tile
                pl.BlockSpec((tk, c_in_pad), lambda i, k, flags: (k, 0)),      # x k-tile
                pl.BlockSpec((c_in_pad, c_out_pad), lambda i, k, flags: (0, 0)),  # W^T
                pl.BlockSpec((1, c_out_pad), lambda i, k, flags: (0, 0)),      # bias
            ],
            out_specs=pl.BlockSpec((tm, c_out_pad), lambda i, k, flags: (i, 0)),
            scratch_shapes=[pltpu.VMEM((tm, c_in_pad), jnp.float32)],
        ),
        compiler_params=pltpu.CompilerParams(
            dimension_semantics=("parallel", "arbitrary"),
            vmem_limit_bytes=vmem_limit,
        ),
        cost_estimate=pl.CostEstimate(
            flops=flops, transcendentals=transcendentals, bytes_accessed=bytes_accessed),
    )(flags, adj_p, x_p, wt_p, b_p)


def gcn_forward(x, adj_norm, weights, biases, *, activation="relu", tm=512, tk=512):
    """Full GCN forward (inference): [conv -> act (-> dropout=id)]* -> conv -> normalize."""
    if activation.lower() not in ("relu", "tanh"):
        raise NotImplementedError(activation)
    activation = activation.lower()

    n, c_in = x.shape
    c_out = weights[-1].shape[0]
    tm, tk, n_pad = _choose_tiles(n, tm, tk)

    # Pad the adjacency once per forward; compute per-(row-tile, k-tile) nonzero flags
    # (block-sparse skip list) on the f32 padded adjacency, then cast to bf16 for MXU.
    adj_f32 = _pad2d(adj_norm.astype(jnp.float32), n_pad, n_pad)
    flags = (jnp.abs(adj_f32).reshape(n_pad // tm, tm, n_pad // tk, tk)
             .sum(axis=(1, 3)) > 0).astype(jnp.int32).reshape(-1)
    adj_p = adj_f32.astype(jnp.bfloat16)

    # Activations stay padded (lane-dense) and bf16 between layers.  Padded feature
    # columns stay exactly zero (zero weight cols / zero bias pad); padded rows are
    # annihilated by the zero adjacency columns of the next layer's aggregation.
    h = _pad2d(x.astype(jnp.float32), n_pad, _round_up(c_in, LANE)).astype(jnp.bfloat16)

    num_layers = len(weights)
    for li in range(num_layers):
        last = li == num_layers - 1
        h = gcn_conv_layer(adj_p, h, flags, weights[li], biases[li], tm=tm, tk=tk,
                           activation=None if last else activation,
                           l2_normalize=last)
        # dropout: identity at inference (see TODO at top of file)

    return h[:n, :c_out]


def xavier_uniform(key, shape, dtype=jnp.float32):
    # matches torch.nn.init.xavier_uniform_ (gain=1) for a [fan_out, fan_in] weight
    fan_out, fan_in = shape
    limit = jnp.sqrt(6.0 / (fan_in + fan_out))
    return jax.random.uniform(key, shape, dtype, minval=-limit, maxval=limit)


if __name__ == "__main__":
    key = jax.random.PRNGKey(0)
    k_x, k_adj, k_w1, k_w2, k_w3, k_b = jax.random.split(key, 6)

    num_nodes = 640          # pads to 1024 -> 2x2 grid of 512x512 adj tiles
    in_channels = 32
    hidden_channels = 64
    out_channels = 16
    activation = "relu"

    # deterministic synthetic inputs
    x = jax.random.normal(k_x, (num_nodes, in_channels), dtype=jnp.float32)

    # symmetric, degree-normalized dense adjacency (the GCN's adj_norm)
    raw = jax.random.uniform(k_adj, (num_nodes, num_nodes)) < 0.05
    adj = jnp.logical_or(raw, raw.T).astype(jnp.float32)
    adj = adj + jnp.eye(num_nodes, dtype=jnp.float32)   # self loops
    deg = adj.sum(axis=1)
    d_inv_sqrt = 1.0 / jnp.sqrt(deg)
    adj_norm = adj * d_inv_sqrt[:, None] * d_inv_sqrt[None, :]

    # parameters mirroring GCN.__init__ (xavier_uniform weights); small nonzero biases
    # to exercise the bias path (spec zero-inits them; forward semantics unchanged)
    weights = [
        xavier_uniform(k_w1, (hidden_channels, in_channels)),
        xavier_uniform(k_w2, (hidden_channels, hidden_channels)),
        xavier_uniform(k_w3, (out_channels, hidden_channels)),
    ]
    bkeys = jax.random.split(k_b, 3)
    biases = [0.01 * jax.random.normal(bkeys[i], (w.shape[0],), jnp.float32)
              for i, w in enumerate(weights)]

    out = gcn_forward(x, adj_norm, weights, biases, activation=activation)
    out = jax.block_until_ready(out)

    # plain-JAX f32 reference (aggregate first, then linear, per the PyTorch module)
    h = x
    for i in range(len(weights) - 1):
        h = adj_norm @ h
        h = h @ weights[i].T + biases[i]
        h = jnp.maximum(h, 0.0) if activation == "relu" else jnp.tanh(h)
    h = adj_norm @ h
    h = h @ weights[-1].T + biases[-1]
    ref = h / jnp.maximum(jnp.sqrt(jnp.sum(h * h, axis=1, keepdims=True)), 1e-12)

    assert out.shape == (num_nodes, out_channels)
    # bf16 matmul inputs with f32 accumulation -> loosened tolerance vs the f32 ref
    assert jnp.allclose(out, ref, atol=3e-2, rtol=3e-2), float(jnp.max(jnp.abs(out - ref)))

    print("KERNEL_OK")
</pallas_src>

<mosaic_0001>
module attributes {stable_mosaic.version = 11 : i64} {
  func.func @gcn_conv_kernel(%arg0: i32, %arg1: i32, %arg2: memref<4xi32, #tpu.memory_space<smem>>, %arg3: memref<512x512xbf16, #tpu.memory_space<vmem>>, %arg4: memref<512x128xbf16, #tpu.memory_space<vmem>>, %arg5: memref<128x128xbf16, #tpu.memory_space<vmem>>, %arg6: memref<1x128xf32, #tpu.memory_space<vmem>>, %arg7: memref<512x128xbf16, #tpu.memory_space<vmem>>, %arg8: memref<512x128xf32, #tpu.memory_space<vmem>>) attributes {dimension_semantics = [#tpu.dimension_semantics<parallel>, #tpu.dimension_semantics<arbitrary>], iteration_bounds = array<i64: 2, 2>, scalar_prefetch = 1 : i64, scratch_operands = 1 : i64, tpu.core_type = #tpu.core_type<tc>, window_params = [{transform_indices = @transform_0, window_bounds = array<i64: 512, 512>}, {transform_indices = @transform_1, window_bounds = array<i64: 512, 128>}, {pipeline_mode = #tpu.pipeline_mode<synchronous>, transform_indices = @transform_2, window_bounds = array<i64: 128, 128>}, {pipeline_mode = #tpu.pipeline_mode<synchronous>, transform_indices = @transform_3, window_bounds = array<i64: 1, 128>}, {transform_indices = @transform_4, window_bounds = array<i64: 512, 128>}]} {
    %c0_i32 = arith.constant 0 : i32
    %0 = arith.cmpi eq, %arg1, %c0_i32 : i32
    %1 = arith.extui %0 : i1 to i32
    %c0_i32_0 = arith.constant 0 : i32
    %2 = arith.cmpi ne, %1, %c0_i32_0 : i32
    scf.if %2 {
      %cst = arith.constant 0.000000e+00 : f32
      %13 = vector.broadcast %cst : f32 to vector<512x128xf32>
      %c0 = arith.constant 0 : index
      %c0_4 = arith.constant 0 : index
      %14 = vector.load %arg8[%c0, %c0_4] : memref<512x128xf32, #tpu.memory_space<vmem>>, vector<512x128xf32>
      tpu.vector_store %arg8[%c0, %c0_4], %13 {strides = array<i32>} : memref<512x128xf32, #tpu.memory_space<vmem>>, vector<512x128xf32>,
    } else {
    }
    %c2_i32 = arith.constant 2 : i32
    %3 = arith.muli %arg0, %c2_i32 : i32
    %4 = arith.addi %3, %arg1 : i32
    %5 = arith.index_cast %4 : i32 to index
    %6 = memref.load %arg2[%5] : memref<4xi32, #tpu.memory_space<smem>>
    %c0_i32_1 = arith.constant 0 : i32
    %7 = arith.cmpi ne, %6, %c0_i32_1 : i32
    %8 = arith.extui %7 : i1 to i32
    %c0_i32_2 = arith.constant 0 : i32
    %9 = arith.cmpi ne, %8, %c0_i32_2 : i32
    scf.if %9 {
      %c0 = arith.constant 0 : index
      %c0_4 = arith.constant 0 : index
      %13 = vector.load %arg8[%c0, %c0_4] : memref<512x128xf32, #tpu.memory_space<vmem>>, vector<512x128xf32>
      %c0_5 = arith.constant 0 : index
      %c0_6 = arith.constant 0 : index
      %14 = vector.load %arg3[%c0_5, %c0_6] : memref<512x512xbf16, #tpu.memory_space<vmem>>, vector<512x512xbf16>
      %c0_7 = arith.constant 0 : index
      %c0_8 = arith.constant 0 : index
      %15 = vector.load %arg4[%c0_7, %c0_8] : memref<512x128xbf16, #tpu.memory_space<vmem>>, vector<512x128xbf16>
      %cst = arith.constant dense<0.000000e+00> : vector<512x128xf32>
      %16 = tpu.matmul %14, %15, %cst {dimension_numbers = #tpu.dot_dimension_numbers<[1], [0], [0], [1], [0, 0, 1, 1], [], []>} : vector<512x512xbf16>, vector<512x128xbf16>, vector<512x128xf32> -> vector<512x128xf32>
      %17 = arith.addf %13, %16 : vector<512x128xf32>
      %c0_9 = arith.constant 0 : index
      %c0_10 = arith.constant 0 : index
      %18 = vector.load %arg8[%c0_9, %c0_10] : memref<512x128xf32, #tpu.memory_space<vmem>>, vector<512x128xf32>
      tpu.vector_store %arg8[%c0_9, %c0_10], %17 {strides = array<i32>} : memref<512x128xf32, #tpu.memory_space<vmem>>, vector<512x128xf32>,
    } else {
    }
    %c1_i32 = arith.constant 1 : i32
    %10 = arith.cmpi eq, %arg1, %c1_i32 : i32
    %11 = arith.extui %10 : i1 to i32
    %c0_i32_3 = arith.constant 0 : i32
    %12 = arith.cmpi ne, %11, %c0_i32_3 : i32
    scf.if %12 {
      %c0 = arith.constant 0 : index
      %c0_4 = arith.constant 0 : index
      %13 = vector.load %arg8[%c0, %c0_4] : memref<512x128xf32, #tpu.memory_space<vmem>>, vector<512x128xf32>
      %14 = arith.truncf %13 : vector<512x128xf32> to vector<512x128xbf16>
      %c0_5 = arith.constant 0 : index
      %c0_6 = arith.constant 0 : index
      %15 = vector.load %arg5[%c0_5, %c0_6] : memref<128x128xbf16, #tpu.memory_space<vmem>>, vector<128x128xbf16>
      %cst = arith.constant dense<0.000000e+00> : vector<512x128xf32>
      %16 = tpu.matmul %14, %15, %cst {dimension_numbers = #tpu.dot_dimension_numbers<[1], [0], [0], [1], [0, 0, 1, 1], [], []>} : vector<512x128xbf16>, vector<128x128xbf16>, vector<512x128xf32> -> vector<512x128xf32>
      %c0_7 = arith.constant 0 : index
      %c0_8 = arith.constant 0 : index
      %17 = vector.load %arg6[%c0_7, %c0_8] : memref<1x128xf32, #tpu.memory_space<vmem>>, vector<1x128xf32>
      %18 = vector.broadcast %17 : vector<1x128xf32> to vector<512x128xf32>
      %19 = arith.addf %16, %18 : vector<512x128xf32>
      %cst_9 = arith.constant 0.000000e+00 : f32
      %20 = vector.broadcast %cst_9 : f32 to vector<512x128xf32>
      %21 = arith.maximumf %19, %20 : vector<512x128xf32>
      %22 = arith.truncf %21 : vector<512x128xf32> to vector<512x128xbf16>
      %c0_10 = arith.constant 0 : index
      %c0_11 = arith.constant 0 : index
      %23 = vector.load %arg7[%c0_10, %c0_11] : memref<512x128xbf16, #tpu.memory_space<vmem>>, vector<512x128xbf16>
      tpu.vector_store %arg7[%c0_10, %c0_11], %22 {strides = array<i32>} : memref<512x128xbf16, #tpu.memory_space<vmem>>, vector<512x128xbf16>,
    } else {
    }
    return
  }
  func.func @transform_0(%arg0: i32, %arg1: i32, %arg2: memref<4xi32, #tpu.memory_space<smem>>) -> (i32, i32) {
    %c0_i32 = arith.constant 0 : i32
    return %arg0, %arg1 : i32, i32
  }
  func.func @transform_1(%arg0: i32, %arg1: i32, %arg2: memref<4xi32, #tpu.memory_space<smem>>) -> (i32, i32) {
    %c0_i32 = arith.constant 0 : i32
    %c0_i32_0 = arith.constant 0 : i32
    return %arg1, %c0_i32 : i32, i32
  }
  func.func @transform_2(%arg0: i32, %arg1: i32, %arg2: memref<4xi32, #tpu.memory_space<smem>>) -> (i32, i32) {
    %c0_i32 = arith.constant 0 : i32
    %c0_i32_0 = arith.constant 0 : i32
    %c0_i32_1 = arith.constant 0 : i32
    return %c0_i32, %c0_i32_0 : i32, i32
  }
  func.func @transform_3(%arg0: i32, %arg1: i32, %arg2: memref<4xi32, #tpu.memory_space<smem>>) -> (i32, i32) {
    %c0_i32 = arith.constant 0 : i32
    %c0_i32_0 = arith.constant 0 : i32
    %c0_i32_1 = arith.constant 0 : i32
    return %c0_i32, %c0_i32_0 : i32, i32
  }
  func.func @transform_4(%arg0: i32, %arg1: i32, %arg2: memref<4xi32, #tpu.memory_space<smem>>) -> (i32, i32) {
    %c0_i32 = arith.constant 0 : i32
    %c0_i32_0 = arith.constant 0 : i32
    return %arg0, %c0_i32 : i32, i32
  }
}

</mosaic_0001>

<llo_original>
// kernel: tpu_custom_call.1
$region0: #{tpu_custom_call.1}
  #allocation0 [shape = 'u32[]', space=smem, size = 0x4, offset = 0x4, fixed_abs, tag = 'smem constant byte address 0x4 - core index']
  #allocation1 [shape = 'u32[144,128]{1,0:T(1,128)}', space=vmem, size = 0x12000, scoped, tag = 'internal scratch']
  #allocation2 [shape = 'f32[512,128]{1,0:T(8,128)}', space=vmem, size = 0x40000, scoped, tag = 'scratch operand']
  #allocation3 [shape = 's32[1]{0}', space=sflag, size = 0x4, scoped, tag = 'scoped memory for tpu_custom_call.1']
  #allocation4 [shape = 'u8[512]{0}', space=smem, size = 0x200, scoped, tag = 'prefetched SMEM operand 0']
  %s0 = inlined_call_operand.hbm [shape: s32[4], index: 0, kind: input, shape index: {}]
  %s1 = inlined_call_operand.hbm [shape: bf16[1024,1024], index: 1, kind: input, shape index: {}]
  %s2 = inlined_call_operand.hbm [shape: bf16[1024,128], index: 2, kind: input, shape index: {}]
  %s3 = inlined_call_operand.hbm [shape: bf16[128,128], index: 3, kind: input, shape index: {}]
  %s4 = inlined_call_operand.hbm [shape: f32[1,128], index: 4, kind: input, shape index: {}]
  %s5 = inlined_call_operand.hbm [shape: bf16[1024,128], index: 5, kind: output, shape index: {}]
  %s6 = sld [smem:[#allocation0]]
  $region77: #{tpu_custom_call.1} parent=0
    _
  %s8 = ssub.s32 1, %s6
  %s9 = scalar_select 0, %s8, %s6
  %11 = dma.hbm_to_smem %s0, 16, [#allocation4], [#allocation3]
  %12 = dma.done [#allocation3], 16
  %13 = sfence
  $region1: #{tpu_custom_call.1} parent=0
    #allocation5 [shape = 'u8[1048576]{0}', space=vmem, size = 0x100000, scoped, tag = 'input window, operand 1']
    #allocation6 [shape = 's32[2]{0}', space=sflag, size = 0x8, scoped, tag = 'scoped memory for tpu_custom_call.1']
    #allocation7 [shape = 's32[2]{0}', space=sflag, size = 0x8, scoped, tag = 'scoped memory for tpu_custom_call.1']
    #allocation8 [shape = 'u8[262144]{0}', space=vmem, size = 0x40000, scoped, tag = 'input window, operand 2']
    #allocation9 [shape = 's32[2]{0}', space=sflag, size = 0x8, scoped, tag = 'scoped memory for tpu_custom_call.1']
    #allocation10 [shape = 'u8[32768]{0}', space=vmem, size = 0x8000, scoped, tag = 'input window, operand 3, single buffered']
    #allocation11 [shape = 'u8[512]{0}', space=vmem, size = 0x400, scoped, tag = 'input window, operand 4, single buffered']
    #allocation12 [shape = 's32[1]{0}', space=sflag, size = 0x4, scoped, tag = 'scoped memory for tpu_custom_call.1']
    #allocation13 [shape = 'u8[262144]{0}', space=vmem, size = 0x40000, scoped, tag = 'output window, operand 0']
    %14 = vsyncpa [#allocation6], 0
    %s15 = scalar_lea.sflag [#allocation6], 1
    %16 = vsyncpa %s15, 0
    %17 = vsyncpa [#allocation9], 0
    %s18 = scalar_lea.sflag [#allocation9], 1
    %19 = vsyncpa %s18, 0
    %20 = vsyncpa [#allocation12], 0
    %21 = vsyncpa [#allocation7], 0
    %s22 = scalar_lea.sflag [#allocation7], 1
    %23 = vsyncpa %s22, 0
    loop: start=0, step=1, limit=6
    $region2: #{tpu_custom_call.1} parent=1 // loop_pre_header
      _
    $region3: #{tpu_custom_call.1} parent=1 // loop_header
      %s25 = sphi 0, %s29
      %p26 = scmp.ge.s32.totalorder %s25, 6
      %s32 = sphi 0, %s44
      %s33 = sphi 0, %s40
      %s34 = sphi 0, %s32
      %s35 = sphi 0, %s33
      %s36 = sphi 0, %s34
      %s37 = sphi 0, %s35
      %s49 = sphi 0, %s51
      %s52 = sphi 0, %s49
      %s53 = sphi 0, %s52
      %s69 = sphi 0, %s53
      %s75 = sphi 0, %s77
      %s78 = sphi 0, %s75
      %s79 = sphi 0, %s78
      %s95 = sphi 0, %s79
      %s99 = sphi 0, %s99
      %s101 = sphi 0, %s99
      %s102 = sphi 0, %s101
      %s116 = sphi 0, %s102
      %s120 = sphi 0, %s120
      %s122 = sphi 0, %s120
      %s123 = sphi 0, %s122
      %s137 = sphi 0, %s123
      %s143 = sphi 0, %s145
      %s146 = sphi 0, %s143
      %s147 = sphi 0, %s146
      %s163 = sphi 0, %s147
    $region4: #{tpu_custom_call.1} parent=1 // loop_header_branch
      %28 = sbr.rel (%p26) target = $region8
    $region5: #{tpu_custom_call.1} parent=1 // loop_body
      %s30 = ssub.s32 %s25, 1
      %s31 = ssub.s32 %s25, 2
      %s38 = sadd.s32 1, %s33
      %p39 = scmp.ge.s32.totalorder %s38, 2
      %s40 = scalar_select %p39, 0, %s38
      %s41 = sadd.s32 1, %s32
      %s42 = scalar_select %p39, %s41, %s32
      %p43 = scmp.ge.s32.totalorder %s42, 2
      %s44 = scalar_select %p43, 0, %s42
      %s45 = ssub.s32 %s32, %s44
      %s46 = ssub.s32 %s33, %s40
      %s47 = sor.u32 %s45, %s46
      %p48 = scmp.eq.s32.totalorder %s47, 0
      %s50 = sadd.s32 %s49, 1
      %s51 = scalar_select %p48, %s49, %s50
      %p54 = pneg %p48
      %p55 = scmp.eq.s32.totalorder %s25, 3
      %p56 = por %p54, %p55
      %p57 = scmp.ne.s32.totalorder %s49, %s52
      %p58 = scmp.eq.s32.totalorder %s25, 0
      %p59 = por %p57, %p58
      %p60 = scmp.ne.s32.totalorder %s49, %s52
      %p61 = scmp.eq.s32.totalorder %s30, 3
      %p62 = por %p60, %p61
      %p63 = scmp.ne.s32.totalorder %s52, %s53
      %p64 = scmp.eq.s32.totalorder %s30, 0
      %p65 = por %p63, %p64
      %p66 = scmp.ne.s32.totalorder %s52, %s53
      %p67 = scmp.eq.s32.totalorder %s31, 3
      %p68 = por %p66, %p67
      %p70 = scmp.ne.s32.totalorder %s53, %s69
      %p71 = scmp.eq.s32.totalorder %s31, 0
      %p72 = por %p70, %p71
      %s73 = ssub.s32 %s33, %s40
      %p74 = scmp.eq.s32.totalorder %s73, 0
      %s76 = sadd.s32 %s75, 1
      %s77 = scalar_select %p74, %s75, %s76
      %p80 = pneg %p74
      %p81 = scmp.eq.s32.totalorder %s25, 3
      %p82 = por %p80, %p81
      %p83 = scmp.ne.s32.totalorder %s75, %s78
      %p84 = scmp.eq.s32.totalorder %s25, 0
      %p85 = por %p83, %p84
      %p86 = scmp.ne.s32.totalorder %s75, %s78
      %p87 = scmp.eq.s32.totalorder %s30, 3
      %p88 = por %p86, %p87
      %p89 = scmp.ne.s32.totalorder %s78, %s79
      %p90 = scmp.eq.s32.totalorder %s30, 0
      %p91 = por %p89, %p90
      %p92 = scmp.ne.s32.totalorder %s78, %s79
      %p93 = scmp.eq.s32.totalorder %s31, 3
      %p94 = por %p92, %p93
      %p96 = scmp.ne.s32.totalorder %s79, %s95
      %p97 = scmp.eq.s32.totalorder %s31, 0
      %p98 = por %p96, %p97
      %s100 = sadd.s32 %s99, 1
      %p103 = scmp.eq.s32.totalorder %s25, 3
      %p104 = scmp.ne.s32.totalorder %s99, %s101
      %p105 = scmp.eq.s32.totalorder %s25, 0
      %p106 = por %p104, %p105
      %p107 = scmp.ne.s32.totalorder %s99, %s101
      %p108 = scmp.eq.s32.totalorder %s30, 3
      %p109 = por %p107, %p108
      %p110 = scmp.ne.s32.totalorder %s101, %s102
      %p111 = scmp.eq.s32.totalorder %s30, 0
      %p112 = por %p110, %p111
      %p113 = scmp.ne.s32.totalorder %s101, %s102
      %p114 = scmp.eq.s32.totalorder %s31, 3
      %p115 = por %p113, %p114
      %p117 = scmp.ne.s32.totalorder %s102, %s116
      %p118 = scmp.eq.s32.totalorder %s31, 0
      %p119 = por %p117, %p118
      %s121 = sadd.s32 %s120, 1
      %p124 = scmp.eq.s32.totalorder %s25, 3
      %p125 = scmp.ne.s32.totalorder %s120, %s122
      %p126 = scmp.eq.s32.totalorder %s25, 0
      %p127 = por %p125, %p126
      %p128 = scmp.ne.s32.totalorder %s120, %s122
      %p129 = scmp.eq.s32.totalorder %s30, 3
      %p130 = por %p128, %p129
      %p131 = scmp.ne.s32.totalorder %s122, %s123
      %p132 = scmp.eq.s32.totalorder %s30, 0
      %p133 = por %p131, %p132
      %p134 = scmp.ne.s32.totalorder %s122, %s123
      %p135 = scmp.eq.s32.totalorder %s31, 3
      %p136 = por %p134, %p135
      %p138 = scmp.ne.s32.totalorder %s123, %s137
      %p139 = scmp.eq.s32.totalorder %s31, 0
      %p140 = por %p138, %p139
      %s141 = ssub.s32 %s32, %s44
      %p142 = scmp.eq.s32.totalorder %s141, 0
      %s144 = sadd.s32 %s143, 1
      %s145 = scalar_select %p142, %s143, %s144
      %p148 = pneg %p142
      %p149 = scmp.eq.s32.totalorder %s25, 3
      %p150 = por %p148, %p149
      %p151 = scmp.ne.s32.totalorder %s143, %s146
      %p152 = scmp.eq.s32.totalorder %s25, 0
      %p153 = por %p151, %p152
      %p154 = scmp.ne.s32.totalorder %s143, %s146
      %p155 = scmp.eq.s32.totalorder %s30, 3
      %p156 = por %p154, %p155
      %p157 = scmp.ne.s32.totalorder %s146, %s147
      %p158 = scmp.eq.s32.totalorder %s30, 0
      %p159 = por %p157, %p158
      %p160 = scmp.ne.s32.totalorder %s146, %s147
      %p161 = scmp.eq.s32.totalorder %s31, 3
      %p162 = por %p160, %p161
      %p164 = scmp.ne.s32.totalorder %s147, %s163
      %p165 = scmp.eq.s32.totalorder %s31, 0
      %p166 = por %p164, %p165
      %p167 = scmp.le.s32.totalorder 1, %s25
      %p168 = scmp.lt.s32.totalorder %s25, 5
      %p169 = pnand %p167, %p168
      %p170 = pneg %p169
      // Predicated region
      $region9: #{tpu_custom_call.1} parent=5 // pred_check
        _
      $region10: #{tpu_custom_call.1} parent=5 // pred_check_branch
        %172 = sbr.rel (%p169) target = $region12
      $region11: #{tpu_custom_call.1} parent=5 // pred_region
        %s173 = ssub.s32 %s25, 1
        // Predicated region
        $region13: #{tpu_custom_call.1} parent=11 // pred_check
          %p174 = pneg %p112
        $region14: #{tpu_custom_call.1} parent=11 // pred_check_branch
          %176 = sbr.rel (%p174) target = $region16
        $region15: #{tpu_custom_call.1} parent=11 // pred_region
          %s178 = ssub.s32 1024, 1024
          %179 = vsyncadd [#allocation9], %s178
          %s180 = sshll.u32 [#allocation10], 4
          %s181 = int_to_ptr.vmem [resolvable:$true] %s180
          %186 = dma.hbm_to_vmem [thread:$0]  %s3, 1024, %s181, [#allocation9], 64, 64, 4
        $region16: #{tpu_custom_call.1} parent=11 // pred_fallthru
          _
        // Predicated region
        $region17: #{tpu_custom_call.1} parent=11 // pred_check
          %p187 = pneg %p133
        $region18: #{tpu_custom_call.1} parent=11 // pred_check_branch
          %189 = sbr.rel (%p187) target = $region20
        $region19: #{tpu_custom_call.1} parent=11 // pred_region
          %s191 = ssub.s32 16, 16
          %192 = vsyncadd [#allocation12], %s191
          %s194 = sshll.u32 [#allocation11], 4
          %s195 = int_to_ptr.vmem [resolvable:$true] %s194
          %197 = dma.hbm_to_vmem [thread:$0]  %s4, 16, %s195, [#allocation12]
        $region20: #{tpu_custom_call.1} parent=11 // pred_fallthru
          _
      $region12: #{tpu_custom_call.1} parent=5 // pred_fallthru
        _
      %p198 = scmp.lt.s32.totalorder %s25, 4
      // Predicated region
      $region21: #{tpu_custom_call.1} parent=5 // pred_check
        %p199 = pneg %p198
      $region22: #{tpu_custom_call.1} parent=5 // pred_check_branch
        %201 = sbr.rel (%p199) target = $region24
      $region23: #{tpu_custom_call.1} parent=5 // pred_region
        // Predicated region
        $region25: #{tpu_custom_call.1} parent=23 // pred_check
          %p202 = pneg %p59
        $region26: #{tpu_custom_call.1} parent=23 // pred_check_branch
          %204 = sbr.rel (%p202) target = $region28
        $region27: #{tpu_custom_call.1} parent=23 // pred_region
          %s205 = sand.u32 %s49, 1
          %s206 = scalar_lea.sflag [#allocation6], %s205
          %s207 = sand.u32 %s49, 1
          %s208 = smul.addr %s207, 1024
          %s209 = scalar_lea.vmem [#allocation5], %s208
          %s210 = smul.u32 64, %s32
          %s211 = smul.u32 4, %s33
          %s213 = ssub.s32 16384, 16384
          %214 = vsyncadd %s206, %s213
          %s215 = smul.addr %s210, 8
          %s216 = sadd.s32 %s211, %s215
          %s217 = smul.addr %s216, 64
          %s218 = scalar_lea.hbm %s1, %s217
          %s219 = sshll.u32 %s209, 4
          %s220 = int_to_ptr.vmem [resolvable:$true] %s219
          %225 = dma.hbm_to_vmem [thread:$0]  %s218, 16384, %s220, %s206, 512, 256, 16
        $region28: #{tpu_custom_call.1} parent=23 // pred_fallthru
          _
        // Predicated region
        $region29: #{tpu_custom_call.1} parent=23 // pred_check
          %p226 = pneg %p85
        $region30: #{tpu_custom_call.1} parent=23 // pred_check_branch
          %228 = sbr.rel (%p226) target = $region32
        $region31: #{tpu_custom_call.1} parent=23 // pred_region
          %s229 = sand.u32 %s25, 1
          %s230 = scalar_lea.sflag [#allocation9], %s229
          %s231 = sand.u32 %s75, 1
          %s232 = smul.addr %s231, 256
          %s233 = scalar_lea.vmem [#allocation8], %s232
          %s234 = smul.u32 64, %s33
          %s236 = ssub.s32 4096, 4096
          %237 = vsyncadd %s230, %s236
          %s238 = smul.addr %s234, 64
          %s239 = scalar_lea.hbm %s2, %s238
          %s240 = sshll.u32 %s233, 4
          %s241 = int_to_ptr.vmem [resolvable:$true] %s240
          %246 = dma.hbm_to_vmem [thread:$0]  %s239, 4096, %s241, %s230, 64, 64, 4
        $region32: #{tpu_custom_call.1} parent=23 // pred_fallthru
          _
      $region24: #{tpu_custom_call.1} parent=5 // pred_fallthru
        _
      %p247 = scmp.le.s32.totalorder 1, %s25
      %p248 = scmp.lt.s32.totalorder %s25, 5
      %p249 = pnand %p247, %p248
      %p250 = pneg %p249
      // Predicated region
      $region33: #{tpu_custom_call.1} parent=5 // pred_check
        _
      $region34: #{tpu_custom_call.1} parent=5 // pred_check_branch
        %252 = sbr.rel (%p249) target = $region36
      $region35: #{tpu_custom_call.1} parent=5 // pred_region
        %s253 = ssub.s32 %s25, 1
        %s254 = sand.u32 %s52, 1
        %s255 = scalar_lea.sflag [#allocation6], %s254
        %s256 = sand.u32 %s52, 1
        %s257 = smul.addr %s256, 1024
        %s258 = scalar_lea.vmem [#allocation5], %s257
        // Predicated region
        $region37: #{tpu_custom_call.1} parent=35 // pred_check
          %p259 = pneg %p65
        $region38: #{tpu_custom_call.1} parent=35 // pred_check_branch
          %261 = sbr.rel (%p259) target = $region40
        $region39: #{tpu_custom_call.1} parent=35 // pred_region
          %262 = dma.done %s255, 16384
        $region40: #{tpu_custom_call.1} parent=35 // pred_fallthru
          _
        %s263 = sand.u32 %s30, 1
        %s264 = scalar_lea.sflag [#allocation9], %s263
        %s265 = sand.u32 %s78, 1
        %s266 = smul.addr %s265, 256
        %s267 = scalar_lea.vmem [#allocation8], %s266
        // Predicated region
        $region41: #{tpu_custom_call.1} parent=35 // pred_check
          %p268 = pneg %p91
        $region42: #{tpu_custom_call.1} parent=35 // pred_check_branch
          %270 = sbr.rel (%p268) target = $region44
        $region43: #{tpu_custom_call.1} parent=35 // pred_region
          %271 = dma.done %s264, 4096
        $region44: #{tpu_custom_call.1} parent=35 // pred_fallthru
          _
        // Predicated region
        $region45: #{tpu_custom_call.1} parent=35 // pred_check
          %p272 = pneg %p112
        $region46: #{tpu_custom_call.1} parent=35 // pred_check_branch
          %274 = sbr.rel (%p272) target = $region48
        $region47: #{tpu_custom_call.1} parent=35 // pred_region
          %275 = dma.done [#allocation9], 1024
        $region48: #{tpu_custom_call.1} parent=35 // pred_fallthru
          _
        // Predicated region
        $region49: #{tpu_custom_call.1} parent=35 // pred_check
          %p276 = pneg %p133
        $region50: #{tpu_custom_call.1} parent=35 // pred_check_branch
          %278 = sbr.rel (%p276) target = $region52
        $region51: #{tpu_custom_call.1} parent=35 // pred_region
          %279 = dma.done [#allocation12], 16
        $region52: #{tpu_custom_call.1} parent=35 // pred_fallthru
          _
        %s280 = sand.u32 %s52, 1
        %s281 = scalar_lea.sflag [#allocation6], %s280
        %s282 = sand.u32 %s52, 1
        %s283 = smul.addr %s282, 1024
        %s284 = scalar_lea.vmem [#allocation5], %s283
        %p285 = pneg %p65
        %p286 = pneg %p62
        %s287 = sand.u32 %s30, 1
        %s288 = scalar_lea.sflag [#allocation9], %s287
        %s289 = sand.u32 %s78, 1
        %s290 = smul.addr %s289, 256
        %s291 = scalar_lea.vmem [#allocation8], %s290
        %p292 = pneg %p91
        %p293 = pneg %p88
        %p294 = pneg %p112
        %p295 = pneg %p109
        %p296 = pneg %p133
        %p297 = pneg %p130
        %p298 = pneg %p159
        %p299 = pneg %p156
        %s300 = sand.u32 %s146, 1
        %s301 = scalar_lea.sflag [#allocation7], %s300
        %s302 = sand.u32 %s146, 1
        %s303 = smul.addr %s302, 256
        %s304 = scalar_lea.vmem [#allocation13], %s303
        %s305 = smul.u32 64, %s34
        %s306 = smul.u32 4, %s35
        %s307 = smul.u32 64, %s35
        %s308 = smul.u32 64, %s34
        %p310 = scmp.eq.s32.totalorder %s35, 0
        // Predicated region
        $region53: #{tpu_custom_call.1} parent=35 // pred_check
          %p311 = pneg %p310
        $region54: #{tpu_custom_call.1} parent=35 // pred_check_branch
          %313 = sbr.rel (%p311) target = $region56
        $region55: #{tpu_custom_call.1} parent=35 // pred_region
          %314 = vst [vmem:[#allocation2] sm:$0xff] 0.0
          %315 = vst [vmem:[#allocation2 + $0x8] sm:$0xff] 0.0
          %316 = vst [vmem:[#allocation2 + $0x10] sm:$0xff] 0.0
          %317 = vst [vmem:[#allocation2 + $0x18] sm:$0xff] 0.0
          %318 = vst [vmem:[#allocation2 + $0x20] sm:$0xff] 0.0
          %319 = vst [vmem:[#allocation2 + $0x28] sm:$0xff] 0.0
          %320 = vst [vmem:[#allocation2 + $0x30] sm:$0xff] 0.0
          %321 = vst [vmem:[#allocation2 + $0x38] sm:$0xff] 0.0
          %322 = vst [vmem:[#allocation2 + $0x40] sm:$0xff] 0.0
          %323 = vst [vmem:[#allocation2 + $0x48] sm:$0xff] 0.0
          %324 = vst [vmem:[#allocation2 + $0x50] sm:$0xff] 0.0
          %325 = vst [vmem:[#allocation2 + $0x58] sm:$0xff] 0.0
          %326 = vst [vmem:[#allocation2 + $0x60] sm:$0xff] 0.0
          %327 = vst [vmem:[#allocation2 + $0x68] sm:$0xff] 0.0
          %328 = vst [vmem:[#allocation2 + $0x70] sm:$0xff] 0.0
          %329 = vst [vmem:[#allocation2 + $0x78] sm:$0xff] 0.0
          %330 = vst [vmem:[#allocation2 + $0x80] sm:$0xff] 0.0
          %331 = vst [vmem:[#allocation2 + $0x88] sm:$0xff] 0.0
          %332 = vst [vmem:[#allocation2 + $0x90] sm:$0xff] 0.0
          %333 = vst [vmem:[#allocation2 + $0x98] sm:$0xff] 0.0
          %334 = vst [vmem:[#allocation2 + $0xa0] sm:$0xff] 0.0
          %335 = vst [vmem:[#allocation2 + $0xa8] sm:$0xff] 0.0
          %336 = vst [vmem:[#allocation2 + $0xb0] sm:$0xff] 0.0
          %337 = vst [vmem:[#allocation2 + $0xb8] sm:$0xff] 0.0
          %338 = vst [vmem:[#allocation2 + $0xc0] sm:$0xff] 0.0
          %339 = vst [vmem:[#allocation2 + $0xc8] sm:$0xff] 0.0
          %340 = vst [vmem:[#allocation2 + $0xd0] sm:$0xff] 0.0
          %341 = vst [vmem:[#allocation2 + $0xd8] sm:$0xff] 0.0
          %342 = vst [vmem:[#allocation2 + $0xe0] sm:$0xff] 0.0
          %343 = vst [vmem:[#allocation2 + $0xe8] sm:$0xff] 0.0
          %344 = vst [vmem:[#allocation2 + $0xf0] sm:$0xff] 0.0
          %345 = vst [vmem:[#allocation2 + $0xf8] sm:$0xff] 0.0
          %346 = vst [vmem:[#allocation2 + $0x100] sm:$0xff] 0.0
          %347 = vst [vmem:[#allocation2 + $0x108] sm:$0xff] 0.0
          %348 = vst [vmem:[#allocation2 + $0x110] sm:$0xff] 0.0
          %349 = vst [vmem:[#allocation2 + $0x118] sm:$0xff] 0.0
          %350 = vst [vmem:[#allocation2 + $0x120] sm:$0xff] 0.0
          %351 = vst [vmem:[#allocation2 + $0x128] sm:$0xff] 0.0
          %352 = vst [vmem:[#allocation2 + $0x130] sm:$0xff] 0.0
          %353 = vst [vmem:[#allocation2 + $0x138] sm:$0xff] 0.0
          %354 = vst [vmem:[#allocation2 + $0x140] sm:$0xff] 0.0
          %355 = vst [vmem:[#allocation2 + $0x148] sm:$0xff] 0.0
          %356 = vst [vmem:[#allocation2 + $0x150] sm:$0xff] 0.0
          %357 = vst [vmem:[#allocation2 + $0x158] sm:$0xff] 0.0
          %358 = vst [vmem:[#allocation2 + $0x160] sm:$0xff] 0.0
          %359 = vst [vmem:[#allocation2 + $0x168] sm:$0xff] 0.0
          %360 = vst [vmem:[#allocation2 + $0x170] sm:$0xff] 0.0
          %361 = vst [vmem:[#allocation2 + $0x178] sm:$0xff] 0.0
          %362 = vst [vmem:[#allocation2 + $0x180] sm:$0xff] 0.0
          %363 = vst [vmem:[#allocation2 + $0x188] sm:$0xff] 0.0
          %364 = vst [vmem:[#allocation2 + $0x190] sm:$0xff] 0.0
          %365 = vst [vmem:[#allocation2 + $0x198] sm:$0xff] 0.0
          %366 = vst [vmem:[#allocation2 + $0x1a0] sm:$0xff] 0.0
          %367 = vst [vmem:[#allocation2 + $0x1a8] sm:$0xff] 0.0
          %368 = vst [vmem:[#allocation2 + $0x1b0] sm:$0xff] 0.0
          %369 = vst [vmem:[#allocation2 + $0x1b8] sm:$0xff] 0.0
          %370 = vst [vmem:[#allocation2 + $0x1c0] sm:$0xff] 0.0
          %371 = vst [vmem:[#allocation2 + $0x1c8] sm:$0xff] 0.0
          %372 = vst [vmem:[#allocation2 + $0x1d0] sm:$0xff] 0.0
          %373 = vst [vmem:[#allocation2 + $0x1d8] sm:$0xff] 0.0
          %374 = vst [vmem:[#allocation2 + $0x1e0] sm:$0xff] 0.0
          %375 = vst [vmem:[#allocation2 + $0x1e8] sm:$0xff] 0.0
          %376 = vst [vmem:[#allocation2 + $0x1f0] sm:$0xff] 0.0
          %377 = vst [vmem:[#allocation2 + $0x1f8] sm:$0xff] 0.0
        $region56: #{tpu_custom_call.1} parent=35 // pred_fallthru
          _
        %s378 = smul.u32 %s34, 2
        %s379 = sadd.s32 %s378, %s35
        %s380 = sld [smem:[#allocation4 + %s379]]
        %p381 = scmp.ne.s32.totalorder %s380, 0
        // Predicated region
        $region57: #{tpu_custom_call.1} parent=35 // pred_check
          %p382 = pneg %p381
        $region58: #{tpu_custom_call.1} parent=35 // pred_check_branch
          %384 = sbr.rel (%p382) target = $region60
        $region59: #{tpu_custom_call.1} parent=35 // pred_region
          %v385 = vld [vmem:[#allocation2] sm:$0xff]
          %v386 = vld [vmem:[#allocation2 + $0x8] sm:$0xff]
          %v387 = vld [vmem:[#allocation2 + $0x10] sm:$0xff]
          %v388 = vld [vmem:[#allocation2 + $0x18] sm:$0xff]
          %v389 = vld [vmem:[#allocation2 + $0x20] sm:$0xff]
          %v390 = vld [vmem:[#allocation2 + $0x28] sm:$0xff]
          %v391 = vld [vmem:[#allocation2 + $0x30] sm:$0xff]
          %v392 = vld [vmem:[#allocation2 + $0x38] sm:$0xff]
          %v393 = vld [vmem:[#allocation2 + $0x40] sm:$0xff]
          %v394 = vld [vmem:[#allocation2 + $0x48] sm:$0xff]
          %v395 = vld [vmem:[#allocation2 + $0x50] sm:$0xff]
          %v396 = vld [vmem:[#allocation2 + $0x58] sm:$0xff]
          %v397 = vld [vmem:[#allocation2 + $0x60] sm:$0xff]
          %v398 = vld [vmem:[#allocation2 + $0x68] sm:$0xff]
          %v399 = vld [vmem:[#allocation2 + $0x70] sm:$0xff]
          %v400 = vld [vmem:[#allocation2 + $0x78] sm:$0xff]
          %v401 = vld [vmem:[#allocation2 + $0x80] sm:$0xff]
          %v402 = vld [vmem:[#allocation2 + $0x88] sm:$0xff]
          %v403 = vld [vmem:[#allocation2 + $0x90] sm:$0xff]
          %v404 = vld [vmem:[#allocation2 + $0x98] sm:$0xff]
          %v405 = vld [vmem:[#allocation2 + $0xa0] sm:$0xff]
          %v406 = vld [vmem:[#allocation2 + $0xa8] sm:$0xff]
          %v407 = vld [vmem:[#allocation2 + $0xb0] sm:$0xff]
          %v408 = vld [vmem:[#allocation2 + $0xb8] sm:$0xff]
          %v409 = vld [vmem:[#allocation2 + $0xc0] sm:$0xff]
          %v410 = vld [vmem:[#allocation2 + $0xc8] sm:$0xff]
          %v411 = vld [vmem:[#allocation2 + $0xd0] sm:$0xff]
          %v412 = vld [vmem:[#allocation2 + $0xd8] sm:$0xff]
          %v413 = vld [vmem:[#allocation2 + $0xe0] sm:$0xff]
          %v414 = vld [vmem:[#allocation2 + $0xe8] sm:$0xff]
          %v415 = vld [vmem:[#allocation2 + $0xf0] sm:$0xff]
          %v416 = vld [vmem:[#allocation2 + $0xf8] sm:$0xff]
          %v417 = vld [vmem:[#allocation2 + $0x100] sm:$0xff]
          %v418 = vld [vmem:[#allocation2 + $0x108] sm:$0xff]
          %v419 = vld [vmem:[#allocation2 + $0x110] sm:$0xff]
          %v420 = vld [vmem:[#allocation2 + $0x118] sm:$0xff]
          %v421 = vld [vmem:[#allocation2 + $0x120] sm:$0xff]
          %v422 = vld [vmem:[#allocation2 + $0x128] sm:$0xff]
          %v423 = vld [vmem:[#allocation2 + $0x130] sm:$0xff]
          %v424 = vld [vmem:[#allocation2 + $0x138] sm:$0xff]
          %v425 = vld [vmem:[#allocation2 + $0x140] sm:$0xff]
          %v426 = vld [vmem:[#allocation2 + $0x148] sm:$0xff]
          %v427 = vld [vmem:[#allocation2 + $0x150] sm:$0xff]
          %v428 = vld [vmem:[#allocation2 + $0x158] sm:$0xff]
          %v429 = vld [vmem:[#allocation2 + $0x160] sm:$0xff]
          %v430 = vld [vmem:[#allocation2 + $0x168] sm:$0xff]
          %v431 = vld [vmem:[#allocation2 + $0x170] sm:$0xff]
          %v432 = vld [vmem:[#allocation2 + $0x178] sm:$0xff]
          %v433 = vld [vmem:[#allocation2 + $0x180] sm:$0xff]
          %v434 = vld [vmem:[#allocation2 + $0x188] sm:$0xff]
          %v435 = vld [vmem:[#allocation2 + $0x190] sm:$0xff]
          %v436 = vld [vmem:[#allocation2 + $0x198] sm:$0xff]
          %v437 = vld [vmem:[#allocation2 + $0x1a0] sm:$0xff]
          %v438 = vld [vmem:[#allocation2 + $0x1a8] sm:$0xff]
          %v439 = vld [vmem:[#allocation2 + $0x1b0] sm:$0xff]
          %v440 = vld [vmem:[#allocation2 + $0x1b8] sm:$0xff]
          %v441 = vld [vmem:[#allocation2 + $0x1c0] sm:$0xff]
          %v442 = vld [vmem:[#allocation2 + $0x1c8] sm:$0xff]
          %v443 = vld [vmem:[#allocation2 + $0x1d0] sm:$0xff]
          %v444 = vld [vmem:[#allocation2 + $0x1d8] sm:$0xff]
          %v445 = vld [vmem:[#allocation2 + $0x1e0] sm:$0xff]
          %v446 = vld [vmem:[#allocation2 + $0x1e8] sm:$0xff]
          %v447 = vld [vmem:[#allocation2 + $0x1f0] sm:$0xff]
          %v448 = vld [vmem:[#allocation2 + $0x1f8] sm:$0xff]
          %v449 = vld [vmem:[%s258] sm:$0xff]
          %v450 = vld [vmem:[%s258 + $0x8] sm:$0xff]
          %v451 = vld [vmem:[%s258 + $0x10] sm:$0xff]
          %v452 = vld [vmem:[%s258 + $0x18] sm:$0xff]
          %v453 = vld [vmem:[%s258 + $0x20] sm:$0xff]
          %v454 = vld [vmem:[%s258 + $0x28] sm:$0xff]
          %v455 = vld [vmem:[%s258 + $0x30] sm:$0xff]
          %v456 = vld [vmem:[%s258 + $0x38] sm:$0xff]
          %v457 = vld [vmem:[%s258 + $0x40] sm:$0xff]
          %v458 = vld [vmem:[%s258 + $0x48] sm:$0xff]
          %v459 = vld [vmem:[%s258 + $0x50] sm:$0xff]
          %v460 = vld [vmem:[%s258 + $0x58] sm:$0xff]
          %v461 = vld [vmem:[%s258 + $0x60] sm:$0xff]
          %v462 = vld [vmem:[%s258 + $0x68] sm:$0xff]
          %v463 = vld [vmem:[%s258 + $0x70] sm:$0xff]
          %v464 = vld [vmem:[%s258 + $0x78] sm:$0xff]
          %v465 = vld [vmem:[%s258 + $0x80] sm:$0xff]
          %v466 = vld [vmem:[%s258 + $0x88] sm:$0xff]
          %v467 = vld [vmem:[%s258 + $0x90] sm:$0xff]
          %v468 = vld [vmem:[%s258 + $0x98] sm:$0xff]
          %v469 = vld [vmem:[%s258 + $0xa0] sm:$0xff]
          %v470 = vld [vmem:[%s258 + $0xa8] sm:$0xff]
          %v471 = vld [vmem:[%s258 + $0xb0] sm:$0xff]
          %v472 = vld [vmem:[%s258 + $0xb8] sm:$0xff]
          %v473 = vld [vmem:[%s258 + $0xc0] sm:$0xff]
          %v474 = vld [vmem:[%s258 + $0xc8] sm:$0xff]
          %v475 = vld [vmem:[%s258 + $0xd0] sm:$0xff]
          %v476 = vld [vmem:[%s258 + $0xd8] sm:$0xff]
          %v477 = vld [vmem:[%s258 + $0xe0] sm:$0xff]
          %v478 = vld [vmem:[%s258 + $0xe8] sm:$0xff]
          %v479 = vld [vmem:[%s258 + $0xf0] sm:$0xff]
          %v480 = vld [vmem:[%s258 + $0xf8] sm:$0xff]
          %v481 = vld [vmem:[%s258 + $0x100] sm:$0xff]
          %v482 = vld [vmem:[%s258 + $0x108] sm:$0xff]
          %v483 = vld [vmem:[%s258 + $0x110] sm:$0xff]
          %v484 = vld [vmem:[%s258 + $0x118] sm:$0xff]
          %v485 = vld [vmem:[%s258 + $0x120] sm:$0xff]
          %v486 = vld [vmem:[%s258 + $0x128] sm:$0xff]
          %v487 = vld [vmem:[%s258 + $0x130] sm:$0xff]
          %v488 = vld [vmem:[%s258 + $0x138] sm:$0xff]
          %v489 = vld [vmem:[%s258 + $0x140] sm:$0xff]
          %v490 = vld [vmem:[%s258 + $0x148] sm:$0xff]
          %v491 = vld [vmem:[%s258 + $0x150] sm:$0xff]
          %v492 = vld [vmem:[%s258 + $0x158] sm:$0xff]
          %v493 = vld [vmem:[%s258 + $0x160] sm:$0xff]
          %v494 = vld [vmem:[%s258 + $0x168] sm:$0xff]
          %v495 = vld [vmem:[%s258 + $0x170] sm:$0xff]
          %v496 = vld [vmem:[%s258 + $0x178] sm:$0xff]
          %v497 = vld [vmem:[%s258 + $0x180] sm:$0xff]
          %v498 = vld [vmem:[%s258 + $0x188] sm:$0xff]
          %v499 = vld [vmem:[%s258 + $0x190] sm:$0xff]
          %v500 = vld [vmem:[%s258 + $0x198] sm:$0xff]
          %v501 = vld [vmem:[%s258 + $0x1a0] sm:$0xff]
          %v502 = vld [vmem:[%s258 + $0x1a8] sm:$0xff]
          %v503 = vld [vmem:[%s258 + $0x1b0] sm:$0xff]
          %v504 = vld [vmem:[%s258 + $0x1b8] sm:$0xff]
          %v505 = vld [vmem:[%s258 + $0x1c0] sm:$0xff]
          %v506 = vld [vmem:[%s258 + $0x1c8] sm:$0xff]
          %v507 = vld [vmem:[%s258 + $0x1d0] sm:$0xff]
          %v508 = vld [vmem:[%s258 + $0x1d8] sm:$0xff]
          %v509 = vld [vmem:[%s258 + $0x1e0] sm:$0xff]
          %v510 = vld [vmem:[%s258 + $0x1e8] sm:$0xff]
          %v511 = vld [vmem:[%s258 + $0x1f0] sm:$0xff]
          %v512 = vld [vmem:[%s258 + $0x1f8] sm:$0xff]
          %v513 = vld [vmem:[%s258 + $0x200] sm:$0xff]
          %v514 = vld [vmem:[%s258 + $0x208] sm:$0xff]
          %v515 = vld [vmem:[%s258 + $0x210] sm:$0xff]
          %v516 = vld [vmem:[%s258 + $0x218] sm:$0xff]
          %v517 = vld [vmem:[%s258 + $0x220] sm:$0xff]
          %v518 = vld [vmem:[%s258 + $0x228] sm:$0xff]
          %v519 = vld [vmem:[%s258 + $0x230] sm:$0xff]
          %v520 = vld [vmem:[%s258 + $0x238] sm:$0xff]
          %v521 = vld [vmem:[%s258 + $0x240] sm:$0xff]
          %v522 = vld [vmem:[%s258 + $0x248] sm:$0xff]
          %v523 = vld [vmem:[%s258 + $0x250] sm:$0xff]
          %v524 = vld [vmem:[%s258 + $0x258] sm:$0xff]
          %v525 = vld [vmem:[%s258 + $0x260] sm:$0xff]
          %v526 = vld [vmem:[%s258 + $0x268] sm:$0xff]
          %v527 = vld [vmem:[%s258 + $0x270] sm:$0xff]
          %v528 = vld [vmem:[%s258 + $0x278] sm:$0xff]
          %v529 = vld [vmem:[%s258 + $0x280] sm:$0xff]
          %v530 = vld [vmem:[%s258 + $0x288] sm:$0xff]
          %v531 = vld [vmem:[%s258 + $0x290] sm:$0xff]
          %v532 = vld [vmem:[%s258 + $0x298] sm:$0xff]
          %v533 = vld [vmem:[%s258 + $0x2a0] sm:$0xff]
          %v534 = vld [vmem:[%s258 + $0x2a8] sm:$0xff]
          %v535 = vld [vmem:[%s258 + $0x2b0] sm:$0xff]
          %v536 = vld [vmem:[%s258 + $0x2b8] sm:$0xff]
          %v537 = vld [vmem:[%s258 + $0x2c0] sm:$0xff]
          %v538 = vld [vmem:[%s258 + $0x2c8] sm:$0xff]
          %v539 = vld [vmem:[%s258 + $0x2d0] sm:$0xff]
          %v540 = vld [vmem:[%s258 + $0x2d8] sm:$0xff]
          %v541 = vld [vmem:[%s258 + $0x2e0] sm:$0xff]
          %v542 = vld [vmem:[%s258 + $0x2e8] sm:$0xff]
          %v543 = vld [vmem:[%s258 + $0x2f0] sm:$0xff]
          %v544 = vld [vmem:[%s258 + $0x2f8] sm:$0xff]
          %v545 = vld [vmem:[%s258 + $0x300] sm:$0xff]
          %v546 = vld [vmem:[%s258 + $0x308] sm:$0xff]
          %v547 = vld [vmem:[%s258 + $0x310] sm:$0xff]
          %v548 = vld [vmem:[%s258 + $0x318] sm:$0xff]
          %v549 = vld [vmem:[%s258 + $0x320] sm:$0xff]
          %v550 = vld [vmem:[%s258 + $0x328] sm:$0xff]
          %v551 = vld [vmem:[%s258 + $0x330] sm:$0xff]
          %v552 = vld [vmem:[%s258 + $0x338] sm:$0xff]
          %v553 = vld [vmem:[%s258 + $0x340] sm:$0xff]
          %v554 = vld [vmem:[%s258 + $0x348] sm:$0xff]
          %v555 = vld [vmem:[%s258 + $0x350] sm:$0xff]
          %v556 = vld [vmem:[%s258 + $0x358] sm:$0xff]
          %v557 = vld [vmem:[%s258 + $0x360] sm:$0xff]
          %v558 = vld [vmem:[%s258 + $0x368] sm:$0xff]
          %v559 = vld [vmem:[%s258 + $0x370] sm:$0xff]
          %v560 = vld [vmem:[%s258 + $0x378] sm:$0xff]
          %v561 = vld [vmem:[%s258 + $0x380] sm:$0xff]
          %v562 = vld [vmem:[%s258 + $0x388] sm:$0xff]
          %v563 = vld [vmem:[%s258 + $0x390] sm:$0xff]
          %v564 = vld [vmem:[%s258 + $0x398] sm:$0xff]
          %v565 = vld [vmem:[%s258 + $0x3a0] sm:$0xff]
          %v566 = vld [vmem:[%s258 + $0x3a8] sm:$0xff]
          %v567 = vld [vmem:[%s258 + $0x3b0] sm:$0xff]
          %v568 = vld [vmem:[%s258 + $0x3b8] sm:$0xff]
          %v569 = vld [vmem:[%s258 + $0x3c0] sm:$0xff]
          %v570 = vld [vmem:[%s258 + $0x3c8] sm:$0xff]
          %v571 = vld [vmem:[%s258 + $0x3d0] sm:$0xff]
          %v572 = vld [vmem:[%s258 + $0x3d8] sm:$0xff]
          %v573 = vld [vmem:[%s258 + $0x3e0] sm:$0xff]
          %v574 = vld [vmem:[%s258 + $0x3e8] sm:$0xff]
          %v575 = vld [vmem:[%s258 + $0x3f0] sm:$0xff]
          %v576 = vld [vmem:[%s258 + $0x3f8] sm:$0xff]
          %v577 = vld [vmem:[%s267] sm:$0xf]
          %v578 = vld [vmem:[%s267 + $0x4] sm:$0xf]
          %v579 = vld [vmem:[%s267 + $0x8] sm:$0xf]
          %v580 = vld [vmem:[%s267 + $0xc] sm:$0xf]
          %v581 = vld [vmem:[%s267 + $0x10] sm:$0xf]
          %v582 = vld [vmem:[%s267 + $0x14] sm:$0xf]
          %v583 = vld [vmem:[%s267 + $0x18] sm:$0xf]
          %v584 = vld [vmem:[%s267 + $0x1c] sm:$0xf]
          %v585 = vld [vmem:[%s267 + $0x20] sm:$0xf]
          %v586 = vld [vmem:[%s267 + $0x24] sm:$0xf]
          %v587 = vld [vmem:[%s267 + $0x28] sm:$0xf]
          %v588 = vld [vmem:[%s267 + $0x2c] sm:$0xf]
          %v589 = vld [vmem:[%s267 + $0x30] sm:$0xf]
          %v590 = vld [vmem:[%s267 + $0x34] sm:$0xf]
          %v591 = vld [vmem:[%s267 + $0x38] sm:$0xf]
          %v592 = vld [vmem:[%s267 + $0x3c] sm:$0xf]
          %v593 = vld [vmem:[%s267 + $0x40] sm:$0xf]
          %v594 = vld [vmem:[%s267 + $0x44] sm:$0xf]
          %v595 = vld [vmem:[%s267 + $0x48] sm:$0xf]
          %v596 = vld [vmem:[%s267 + $0x4c] sm:$0xf]
          %v597 = vld [vmem:[%s267 + $0x50] sm:$0xf]
          %v598 = vld [vmem:[%s267 + $0x54] sm:$0xf]
          %v599 = vld [vmem:[%s267 + $0x58] sm:$0xf]
          %v600 = vld [vmem:[%s267 + $0x5c] sm:$0xf]
          %v601 = vld [vmem:[%s267 + $0x60] sm:$0xf]
          %v602 = vld [vmem:[%s267 + $0x64] sm:$0xf]
          %v603 = vld [vmem:[%s267 + $0x68] sm:$0xf]
          %v604 = vld [vmem:[%s267 + $0x6c] sm:$0xf]
          %v605 = vld [vmem:[%s267 + $0x70] sm:$0xf]
          %v606 = vld [vmem:[%s267 + $0x74] sm:$0xf]
          %v607 = vld [vmem:[%s267 + $0x78] sm:$0xf]
          %v608 = vld [vmem:[%s267 + $0x7c] sm:$0xf]
          %v609 = vld [vmem:[%s267 + $0x80] sm:$0xf]
          %v610 = vld [vmem:[%s267 + $0x84] sm:$0xf]
          %v611 = vld [vmem:[%s267 + $0x88] sm:$0xf]
          %v612 = vld [vmem:[%s267 + $0x8c] sm:$0xf]
          %v613 = vld [vmem:[%s267 + $0x90] sm:$0xf]
          %v614 = vld [vmem:[%s267 + $0x94] sm:$0xf]
          %v615 = vld [vmem:[%s267 + $0x98] sm:$0xf]
          %v616 = vld [vmem:[%s267 + $0x9c] sm:$0xf]
          %v617 = vld [vmem:[%s267 + $0xa0] sm:$0xf]
          %v618 = vld [vmem:[%s267 + $0xa4] sm:$0xf]
          %v619 = vld [vmem:[%s267 + $0xa8] sm:$0xf]
          %v620 = vld [vmem:[%s267 + $0xac] sm:$0xf]
          %v621 = vld [vmem:[%s267 + $0xb0] sm:$0xf]
          %v622 = vld [vmem:[%s267 + $0xb4] sm:$0xf]
          %v623 = vld [vmem:[%s267 + $0xb8] sm:$0xf]
          %v624 = vld [vmem:[%s267 + $0xbc] sm:$0xf]
          %v625 = vld [vmem:[%s267 + $0xc0] sm:$0xf]
          %v626 = vld [vmem:[%s267 + $0xc4] sm:$0xf]
          %v627 = vld [vmem:[%s267 + $0xc8] sm:$0xf]
          %v628 = vld [vmem:[%s267 + $0xcc] sm:$0xf]
          %v629 = vld [vmem:[%s267 + $0xd0] sm:$0xf]
          %v630 = vld [vmem:[%s267 + $0xd4] sm:$0xf]
          %v631 = vld [vmem:[%s267 + $0xd8] sm:$0xf]
          %v632 = vld [vmem:[%s267 + $0xdc] sm:$0xf]
          %v633 = vld [vmem:[%s267 + $0xe0] sm:$0xf]
          %v634 = vld [vmem:[%s267 + $0xe4] sm:$0xf]
          %v635 = vld [vmem:[%s267 + $0xe8] sm:$0xf]
          %v636 = vld [vmem:[%s267 + $0xec] sm:$0xf]
          %v637 = vld [vmem:[%s267 + $0xf0] sm:$0xf]
          %v638 = vld [vmem:[%s267 + $0xf4] sm:$0xf]
          %v639 = vld [vmem:[%s267 + $0xf8] sm:$0xf]
          %v640 = vld [vmem:[%s267 + $0xfc] sm:$0xf]
          %v769 = vunpack.c.l.b16 %v449
          %v770 = vunpack.c.h.b16 %v449
          %v771 = vunpack.c.l.b16 %v450
          %v772 = vunpack.c.h.b16 %v450
          %v773 = vunpack.c.l.b16 %v451
          %v774 = vunpack.c.h.b16 %v451
          %v775 = vunpack.c.l.b16 %v452
          %v776 = vunpack.c.h.b16 %v452
          %v777 = vunpack.c.l.b16 %v453
          %v778 = vunpack.c.h.b16 %v453
          %v779 = vunpack.c.l.b16 %v454
          %v780 = vunpack.c.h.b16 %v454
          %v781 = vunpack.c.l.b16 %v455
          %v782 = vunpack.c.h.b16 %v455
          %v783 = vunpack.c.l.b16 %v456
          %v784 = vunpack.c.h.b16 %v456
          %v785 = vunpack.c.l.b16 %v457
          %v786 = vunpack.c.h.b16 %v457
          %v787 = vunpack.c.l.b16 %v458
          %v788 = vunpack.c.h.b16 %v458
          %v789 = vunpack.c.l.b16 %v459
          %v790 = vunpack.c.h.b16 %v459
          %v791 = vunpack.c.l.b16 %v460
          %v792 = vunpack.c.h.b16 %v460
          %v793 = vunpack.c.l.b16 %v461
          %v794 = vunpack.c.h.b16 %v461
          %v795 = vunpack.c.l.b16 %v462
          %v796 = vunpack.c.h.b16 %v462
          %v797 = vunpack.c.l.b16 %v463
          %v798 = vunpack.c.h.b16 %v463
          %v799 = vunpack.c.l.b16 %v464
          %v800 = vunpack.c.h.b16 %v464
          %v801 = vunpack.c.l.b16 %v465
          %v802 = vunpack.c.h.b16 %v465
          %v803 = vunpack.c.l.b16 %v466
          %v804 = vunpack.c.h.b16 %v466
          %v805 = vunpack.c.l.b16 %v467
          %v806 = vunpack.c.h.b16 %v467
          %v807 = vunpack.c.l.b16 %v468
          %v808 = vunpack.c.h.b16 %v468
          %v809 = vunpack.c.l.b16 %v469
          %v810 = vunpack.c.h.b16 %v469
          %v811 = vunpack.c.l.b16 %v470
          %v812 = vunpack.c.h.b16 %v470
          %v813 = vunpack.c.l.b16 %v471
          %v814 = vunpack.c.h.b16 %v471
          %v815 = vunpack.c.l.b16 %v472
          %v816 = vunpack.c.h.b16 %v472
          %v817 = vunpack.c.l.b16 %v473
          %v818 = vunpack.c.h.b16 %v473
          %v819 = vunpack.c.l.b16 %v474
          %v820 = vunpack.c.h.b16 %v474
          %v821 = vunpack.c.l.b16 %v475
          %v822 = vunpack.c.h.b16 %v475
          %v823 = vunpack.c.l.b16 %v476
          %v824 = vunpack.c.h.b16 %v476
          %v825 = vunpack.c.l.b16 %v477
          %v826 = vunpack.c.h.b16 %v477
          %v827 = vunpack.c.l.b16 %v478
          %v828 = vunpack.c.h.b16 %v478
          %v829 = vunpack.c.l.b16 %v479
          %v830 = vunpack.c.h.b16 %v479
          %v831 = vunpack.c.l.b16 %v480
          %v832 = vunpack.c.h.b16 %v480
          %v833 = vunpack.c.l.b16 %v481
          %v834 = vunpack.c.h.b16 %v481
          %v835 = vunpack.c.l.b16 %v482
          %v836 = vunpack.c.h.b16 %v482
          %v837 = vunpack.c.l.b16 %v483
          %v838 = vunpack.c.h.b16 %v483
          %v839 = vunpack.c.l.b16 %v484
          %v840 = vunpack.c.h.b16 %v484
          %v841 = vunpack.c.l.b16 %v485
          %v842 = vunpack.c.h.b16 %v485
          %v843 = vunpack.c.l.b16 %v486
          %v844 = vunpack.c.h.b16 %v486
          %v845 = vunpack.c.l.b16 %v487
          %v846 = vunpack.c.h.b16 %v487
          %v847 = vunpack.c.l.b16 %v488
          %v848 = vunpack.c.h.b16 %v488
          %v849 = vunpack.c.l.b16 %v489
          %v850 = vunpack.c.h.b16 %v489
          %v851 = vunpack.c.l.b16 %v490
          %v852 = vunpack.c.h.b16 %v490
          %v853 = vunpack.c.l.b16 %v491
          %v854 = vunpack.c.h.b16 %v491
          %v855 = vunpack.c.l.b16 %v492
          %v856 = vunpack.c.h.b16 %v492
          %v857 = vunpack.c.l.b16 %v493
          %v858 = vunpack.c.h.b16 %v493
          %v859 = vunpack.c.l.b16 %v494
          %v860 = vunpack.c.h.b16 %v494
          %v861 = vunpack.c.l.b16 %v495
          %v862 = vunpack.c.h.b16 %v495
          %v863 = vunpack.c.l.b16 %v496
          %v864 = vunpack.c.h.b16 %v496
          %v865 = vunpack.c.l.b16 %v497
          %v866 = vunpack.c.h.b16 %v497
          %v867 = vunpack.c.l.b16 %v498
          %v868 = vunpack.c.h.b16 %v498
          %v869 = vunpack.c.l.b16 %v499
          %v870 = vunpack.c.h.b16 %v499
          %v871 = vunpack.c.l.b16 %v500
          %v872 = vunpack.c.h.b16 %v500
          %v873 = vunpack.c.l.b16 %v501
          %v874 = vunpack.c.h.b16 %v501
          %v875 = vunpack.c.l.b16 %v502
          %v876 = vunpack.c.h.b16 %v502
          %v877 = vunpack.c.l.b16 %v503
          %v878 = vunpack.c.h.b16 %v503
          %v879 = vunpack.c.l.b16 %v504
          %v880 = vunpack.c.h.b16 %v504
          %v881 = vunpack.c.l.b16 %v505
          %v882 = vunpack.c.h.b16 %v505
          %v883 = vunpack.c.l.b16 %v506
          %v884 = vunpack.c.h.b16 %v506
          %v885 = vunpack.c.l.b16 %v507
          %v886 = vunpack.c.h.b16 %v507
          %v887 = vunpack.c.l.b16 %v508
          %v888 = vunpack.c.h.b16 %v508
          %v889 = vunpack.c.l.b16 %v509
          %v890 = vunpack.c.h.b16 %v509
          %v891 = vunpack.c.l.b16 %v510
          %v892 = vunpack.c.h.b16 %v510
          %v893 = vunpack.c.l.b16 %v511
          %v894 = vunpack.c.h.b16 %v511
          %v895 = vunpack.c.l.b16 %v512
          %v896 = vunpack.c.h.b16 %v512
          %v897 = vunpack.c.l.b16 %v513
          %v898 = vunpack.c.h.b16 %v513
          %v899 = vunpack.c.l.b16 %v514
          %v900 = vunpack.c.h.b16 %v514
          %v901 = vunpack.c.l.b16 %v515
          %v902 = vunpack.c.h.b16 %v515
          %v903 = vunpack.c.l.b16 %v516
          %v904 = vunpack.c.h.b16 %v516
          %v905 = vunpack.c.l.b16 %v517
          %v906 = vunpack.c.h.b16 %v517
          %v907 = vunpack.c.l.b16 %v518
          %v908 = vunpack.c.h.b16 %v518
          %v909 = vunpack.c.l.b16 %v519
          %v910 = vunpack.c.h.b16 %v519
          %v911 = vunpack.c.l.b16 %v520
          %v912 = vunpack.c.h.b16 %v520
          %v913 = vunpack.c.l.b16 %v521
          %v914 = vunpack.c.h.b16 %v521
          %v915 = vunpack.c.l.b16 %v522
          %v916 = vunpack.c.h.b16 %v522
          %v917 = vunpack.c.l.b16 %v523
          %v918 = vunpack.c.h.b16 %v523
          %v919 = vunpack.c.l.b16 %v524
          %v920 = vunpack.c.h.b16 %v524
          %v921 = vunpack.c.l.b16 %v525
          %v922 = vunpack.c.h.b16 %v525
          %v923 = vunpack.c.l.b16 %v526
          %v924 = vunpack.c.h.b16 %v526
          %v925 = vunpack.c.l.b16 %v527
          %v926 = vunpack.c.h.b16 %v527
          %v927 = vunpack.c.l.b16 %v528
          %v928 = vunpack.c.h.b16 %v528
          %v929 = vunpack.c.l.b16 %v529
          %v930 = vunpack.c.h.b16 %v529
          %v931 = vunpack.c.l.b16 %v530
          %v932 = vunpack.c.h.b16 %v530
          %v933 = vunpack.c.l.b16 %v531
          %v934 = vunpack.c.h.b16 %v531
          %v935 = vunpack.c.l.b16 %v532
          %v936 = vunpack.c.h.b16 %v532
          %v937 = vunpack.c.l.b16 %v533
          %v938 = vunpack.c.h.b16 %v533
          %v939 = vunpack.c.l.b16 %v534
          %v940 = vunpack.c.h.b16 %v534
          %v941 = vunpack.c.l.b16 %v535
          %v942 = vunpack.c.h.b16 %v535
          %v943 = vunpack.c.l.b16 %v536
          %v944 = vunpack.c.h.b16 %v536
          %v945 = vunpack.c.l.b16 %v537
          %v946 = vunpack.c.h.b16 %v537
          %v947 = vunpack.c.l.b16 %v538
          %v948 = vunpack.c.h.b16 %v538
          %v949 = vunpack.c.l.b16 %v539
          %v950 = vunpack.c.h.b16 %v539
          %v951 = vunpack.c.l.b16 %v540
          %v952 = vunpack.c.h.b16 %v540
          %v953 = vunpack.c.l.b16 %v541
          %v954 = vunpack.c.h.b16 %v541
          %v955 = vunpack.c.l.b16 %v542
          %v956 = vunpack.c.h.b16 %v542
          %v957 = vunpack.c.l.b16 %v543
          %v958 = vunpack.c.h.b16 %v543
          %v959 = vunpack.c.l.b16 %v544
          %v960 = vunpack.c.h.b16 %v544
          %v961 = vunpack.c.l.b16 %v545
          %v962 = vunpack.c.h.b16 %v545
          %v963 = vunpack.c.l.b16 %v546
          %v964 = vunpack.c.h.b16 %v546
          %v965 = vunpack.c.l.b16 %v547
          %v966 = vunpack.c.h.b16 %v547
          %v967 = vunpack.c.l.b16 %v548
          %v968 = vunpack.c.h.b16 %v548
          %v969 = vunpack.c.l.b16 %v549
          %v970 = vunpack.c.h.b16 %v549
          %v971 = vunpack.c.l.b16 %v550
          %v972 = vunpack.c.h.b16 %v550
          %v973 = vunpack.c.l.b16 %v551
          %v974 = vunpack.c.h.b16 %v551
          %v975 = vunpack.c.l.b16 %v552
          %v976 = vunpack.c.h.b16 %v552
          %v977 = vunpack.c.l.b16 %v553
          %v978 = vunpack.c.h.b16 %v553
          %v979 = vunpack.c.l.b16 %v554
          %v980 = vunpack.c.h.b16 %v554
          %v981 = vunpack.c.l.b16 %v555
          %v982 = vunpack.c.h.b16 %v555
          %v983 = vunpack.c.l.b16 %v556
          %v984 = vunpack.c.h.b16 %v556
          %v985 = vunpack.c.l.b16 %v557
          %v986 = vunpack.c.h.b16 %v557
          %v987 = vunpack.c.l.b16 %v558
          %v988 = vunpack.c.h.b16 %v558
          %v989 = vunpack.c.l.b16 %v559
          %v990 = vunpack.c.h.b16 %v559
          %v991 = vunpack.c.l.b16 %v560
          %v992 = vunpack.c.h.b16 %v560
          %v993 = vunpack.c.l.b16 %v561
          %v994 = vunpack.c.h.b16 %v561
          %v995 = vunpack.c.l.b16 %v562
          %v996 = vunpack.c.h.b16 %v562
          %v997 = vunpack.c.l.b16 %v563
          %v998 = vunpack.c.h.b16 %v563
          %v999 = vunpack.c.l.b16 %v564
          %v1000 = vunpack.c.h.b16 %v564
          %v1001 = vunpack.c.l.b16 %v565
          %v1002 = vunpack.c.h.b16 %v565
          %v1003 = vunpack.c.l.b16 %v566
          %v1004 = vunpack.c.h.b16 %v566
          %v1005 = vunpack.c.l.b16 %v567
          %v1006 = vunpack.c.h.b16 %v567
          %v1007 = vunpack.c.l.b16 %v568
          %v1008 = vunpack.c.h.b16 %v568
          %v1009 = vunpack.c.l.b16 %v569
          %v1010 = vunpack.c.h.b16 %v569
          %v1011 = vunpack.c.l.b16 %v570
          %v1012 = vunpack.c.h.b16 %v570
          %v1013 = vunpack.c.l.b16 %v571
          %v1014 = vunpack.c.h.b16 %v571
          %v1015 = vunpack.c.l.b16 %v572
          %v1016 = vunpack.c.h.b16 %v572
          %v1017 = vunpack.c.l.b16 %v573
          %v1018 = vunpack.c.h.b16 %v573
          %v1019 = vunpack.c.l.b16 %v574
          %v1020 = vunpack.c.h.b16 %v574
          %v1021 = vunpack.c.l.b16 %v575
          %v1022 = vunpack.c.h.b16 %v575
          %v1023 = vunpack.c.l.b16 %v576
          %v1024 = vunpack.c.h.b16 %v576
          %v1025 = vpack.c.b16 %v773, %v769
          %v1026 = vpack.c.b16 %v774, %v770
          %v1027 = vpack.c.b16 %v775, %v771
          %v1028 = vpack.c.b16 %v776, %v772
          %v1029 = vpack.c.b16 %v781, %v777
          %v1030 = vpack.c.b16 %v782, %v778
          %v1031 = vpack.c.b16 %v783, %v779
          %v1032 = vpack.c.b16 %v784, %v780
          %v1033 = vpack.c.b16 %v789, %v785
          %v1034 = vpack.c.b16 %v790, %v786
          %v1035 = vpack.c.b16 %v791, %v787
          %v1036 = vpack.c.b16 %v792, %v788
          %v1037 = vpack.c.b16 %v797, %v793
          %v1038 = vpack.c.b16 %v798, %v794
          %v1039 = vpack.c.b16 %v799, %v795
          %v1040 = vpack.c.b16 %v800, %v796
          %v1041 = vpack.c.b16 %v805, %v801
          %v1042 = vpack.c.b16 %v806, %v802
          %v1043 = vpack.c.b16 %v807, %v803
          %v1044 = vpack.c.b16 %v808, %v804
          %v1045 = vpack.c.b16 %v813, %v809
          %v1046 = vpack.c.b16 %v814, %v810
          %v1047 = vpack.c.b16 %v815, %v811
          %v1048 = vpack.c.b16 %v816, %v812
          %v1049 = vpack.c.b16 %v821, %v817
          %v1050 = vpack.c.b16 %v822, %v818
          %v1051 = vpack.c.b16 %v823, %v819
          %v1052 = vpack.c.b16 %v824, %v820
          %v1053 = vpack.c.b16 %v829, %v825
          %v1054 = vpack.c.b16 %v830, %v826
          %v1055 = vpack.c.b16 %v831, %v827
          %v1056 = vpack.c.b16 %v832, %v828
          %v1057 = vpack.c.b16 %v837, %v833
          %v1058 = vpack.c.b16 %v838, %v834
          %v1059 = vpack.c.b16 %v839, %v835
          %v1060 = vpack.c.b16 %v840, %v836
          %v1061 = vpack.c.b16 %v845, %v841
          %v1062 = vpack.c.b16 %v846, %v842
          %v1063 = vpack.c.b16 %v847, %v843
          %v1064 = vpack.c.b16 %v848, %v844
          %v1065 = vpack.c.b16 %v853, %v849
          %v1066 = vpack.c.b16 %v854, %v850
          %v1067 = vpack.c.b16 %v855, %v851
          %v1068 = vpack.c.b16 %v856, %v852
          %v1069 = vpack.c.b16 %v861, %v857
          %v1070 = vpack.c.b16 %v862, %v858
          %v1071 = vpack.c.b16 %v863, %v859
          %v1072 = vpack.c.b16 %v864, %v860
          %v1073 = vpack.c.b16 %v869, %v865
          %v1074 = vpack.c.b16 %v870, %v866
          %v1075 = vpack.c.b16 %v871, %v867
          %v1076 = vpack.c.b16 %v872, %v868
          %v1077 = vpack.c.b16 %v877, %v873
          %v1078 = vpack.c.b16 %v878, %v874
          %v1079 = vpack.c.b16 %v879, %v875
          %v1080 = vpack.c.b16 %v880, %v876
          %v1081 = vpack.c.b16 %v885, %v881
          %v1082 = vpack.c.b16 %v886, %v882
          %v1083 = vpack.c.b16 %v887, %v883
          %v1084 = vpack.c.b16 %v888, %v884
          %v1085 = vpack.c.b16 %v893, %v889
          %v1086 = vpack.c.b16 %v894, %v890
          %v1087 = vpack.c.b16 %v895, %v891
          %v1088 = vpack.c.b16 %v896, %v892
          %v1089 = vpack.c.b16 %v901, %v897
          %v1090 = vpack.c.b16 %v902, %v898
          %v1091 = vpack.c.b16 %v903, %v899
          %v1092 = vpack.c.b16 %v904, %v900
          %v1093 = vpack.c.b16 %v909, %v905
          %v1094 = vpack.c.b16 %v910, %v906
          %v1095 = vpack.c.b16 %v911, %v907
          %v1096 = vpack.c.b16 %v912, %v908
          %v1097 = vpack.c.b16 %v917, %v913
          %v1098 = vpack.c.b16 %v918, %v914
          %v1099 = vpack.c.b16 %v919, %v915
          %v1100 = vpack.c.b16 %v920, %v916
          %v1101 = vpack.c.b16 %v925, %v921
          %v1102 = vpack.c.b16 %v926, %v922
          %v1103 = vpack.c.b16 %v927, %v923
          %v1104 = vpack.c.b16 %v928, %v924
          %v1105 = vpack.c.b16 %v933, %v929
          %v1106 = vpack.c.b16 %v934, %v930
          %v1107 = vpack.c.b16 %v935, %v931
          %v1108 = vpack.c.b16 %v936, %v932
          %v1109 = vpack.c.b16 %v941, %v937
          %v1110 = vpack.c.b16 %v942, %v938
          %v1111 = vpack.c.b16 %v943, %v939
          %v1112 = vpack.c.b16 %v944, %v940
          %v1113 = vpack.c.b16 %v949, %v945
          %v1114 = vpack.c.b16 %v950, %v946
          %v1115 = vpack.c.b16 %v951, %v947
          %v1116 = vpack.c.b16 %v952, %v948
          %v1117 = vpack.c.b16 %v957, %v953
          %v1118 = vpack.c.b16 %v958, %v954
          %v1119 = vpack.c.b16 %v959, %v955
          %v1120 = vpack.c.b16 %v960, %v956
          %v1121 = vpack.c.b16 %v965, %v961
          %v1122 = vpack.c.b16 %v966, %v962
          %v1123 = vpack.c.b16 %v967, %v963
          %v1124 = vpack.c.b16 %v968, %v964
          %v1125 = vpack.c.b16 %v973, %v969
          %v1126 = vpack.c.b16 %v974, %v970
          %v1127 = vpack.c.b16 %v975, %v971
          %v1128 = vpack.c.b16 %v976, %v972
          %v1129 = vpack.c.b16 %v981, %v977
          %v1130 = vpack.c.b16 %v982, %v978
          %v1131 = vpack.c.b16 %v983, %v979
          %v1132 = vpack.c.b16 %v984, %v980
          %v1133 = vpack.c.b16 %v989, %v985
          %v1134 = vpack.c.b16 %v990, %v986
          %v1135 = vpack.c.b16 %v991, %v987
          %v1136 = vpack.c.b16 %v992, %v988
          %v1137 = vpack.c.b16 %v997, %v993
          %v1138 = vpack.c.b16 %v998, %v994
          %v1139 = vpack.c.b16 %v999, %v995
          %v1140 = vpack.c.b16 %v1000, %v996
          %v1141 = vpack.c.b16 %v1005, %v1001
          %v1142 = vpack.c.b16 %v1006, %v1002
          %v1143 = vpack.c.b16 %v1007, %v1003
          %v1144 = vpack.c.b16 %v1008, %v1004
          %v1145 = vpack.c.b16 %v1013, %v1009
          %v1146 = vpack.c.b16 %v1014, %v1010
          %v1147 = vpack.c.b16 %v1015, %v1011
          %v1148 = vpack.c.b16 %v1016, %v1012
          %v1149 = vpack.c.b16 %v1021, %v1017
          %v1150 = vpack.c.b16 %v1022, %v1018
          %v1151 = vpack.c.b16 %v1023, %v1019
          %v1152 = vpack.c.b16 %v1024, %v1020
          %v1345 = vunpack.c.l.b16 %v577
          %v1346 = vunpack.c.l.b16 %v578
          %v1347 = vunpack.c.l.b16 %v579
          %v1348 = vunpack.c.l.b16 %v580
          %v1349 = vunpack.c.l.b16 %v581
          %v1350 = vunpack.c.l.b16 %v582
          %v1351 = vunpack.c.l.b16 %v583
          %v1352 = vunpack.c.l.b16 %v584
          %v1353 = vunpack.c.l.b16 %v585
          %v1354 = vunpack.c.l.b16 %v586
          %v1355 = vunpack.c.l.b16 %v587
          %v1356 = vunpack.c.l.b16 %v588
          %v1357 = vunpack.c.l.b16 %v589
          %v1358 = vunpack.c.l.b16 %v590
          %v1359 = vunpack.c.l.b16 %v591
          %v1360 = vunpack.c.l.b16 %v592
          %v1361 = vunpack.c.l.b16 %v593
          %v1362 = vunpack.c.l.b16 %v594
          %v1363 = vunpack.c.l.b16 %v595
          %v1364 = vunpack.c.l.b16 %v596
          %v1365 = vunpack.c.l.b16 %v597
          %v1366 = vunpack.c.l.b16 %v598
          %v1367 = vunpack.c.l.b16 %v599
          %v1368 = vunpack.c.l.b16 %v600
          %v1369 = vunpack.c.l.b16 %v601
          %v1370 = vunpack.c.l.b16 %v602
          %v1371 = vunpack.c.l.b16 %v603
          %v1372 = vunpack.c.l.b16 %v604
          %v1373 = vunpack.c.l.b16 %v605
          %v1374 = vunpack.c.l.b16 %v606
          %v1375 = vunpack.c.l.b16 %v607
          %v1376 = vunpack.c.l.b16 %v608
          %v1377 = vunpack.c.l.b16 %v609
          %v1378 = vunpack.c.l.b16 %v610
          %v1379 = vunpack.c.l.b16 %v611
          %v1380 = vunpack.c.l.b16 %v612
          %v1381 = vunpack.c.l.b16 %v613
          %v1382 = vunpack.c.l.b16 %v614
          %v1383 = vunpack.c.l.b16 %v615
          %v1384 = vunpack.c.l.b16 %v616
          %v1385 = vunpack.c.l.b16 %v617
          %v1386 = vunpack.c.l.b16 %v618
          %v1387 = vunpack.c.l.b16 %v619
          %v1388 = vunpack.c.l.b16 %v620
          %v1389 = vunpack.c.l.b16 %v621
          %v1390 = vunpack.c.l.b16 %v622
          %v1391 = vunpack.c.l.b16 %v623
          %v1392 = vunpack.c.l.b16 %v624
          %v1393 = vunpack.c.l.b16 %v625
          %v1394 = vunpack.c.l.b16 %v626
          %v1395 = vunpack.c.l.b16 %v627
          %v1396 = vunpack.c.l.b16 %v628
          %v1397 = vunpack.c.l.b16 %v629
          %v1398 = vunpack.c.l.b16 %v630
          %v1399 = vunpack.c.l.b16 %v631
          %v1400 = vunpack.c.l.b16 %v632
          %v1401 = vunpack.c.l.b16 %v633
          %v1402 = vunpack.c.l.b16 %v634
          %v1403 = vunpack.c.l.b16 %v635
          %v1404 = vunpack.c.l.b16 %v636
          %v1405 = vunpack.c.l.b16 %v637
          %v1406 = vunpack.c.l.b16 %v638
          %v1407 = vunpack.c.l.b16 %v639
          %v1408 = vunpack.c.l.b16 %v640
          %v1409 = vpack.c.b16 %v1346, %v1345
          %v1410 = vpack.c.b16 %v1348, %v1347
          %v1411 = vpack.c.b16 %v1350, %v1349
          %v1412 = vpack.c.b16 %v1352, %v1351
          %v1413 = vpack.c.b16 %v1354, %v1353
          %v1414 = vpack.c.b16 %v1356, %v1355
          %v1415 = vpack.c.b16 %v1358, %v1357
          %v1416 = vpack.c.b16 %v1360, %v1359
          %v1417 = vpack.c.b16 %v1362, %v1361
          %v1418 = vpack.c.b16 %v1364, %v1363
          %v1419 = vpack.c.b16 %v1366, %v1365
          %v1420 = vpack.c.b16 %v1368, %v1367
          %v1421 = vpack.c.b16 %v1370, %v1369
          %v1422 = vpack.c.b16 %v1372, %v1371
          %v1423 = vpack.c.b16 %v1374, %v1373
          %v1424 = vpack.c.b16 %v1376, %v1375
          %v1425 = vpack.c.b16 %v1378, %v1377
          %v1426 = vpack.c.b16 %v1380, %v1379
          %v1427 = vpack.c.b16 %v1382, %v1381
          %v1428 = vpack.c.b16 %v1384, %v1383
          %v1429 = vpack.c.b16 %v1386, %v1385
          %v1430 = vpack.c.b16 %v1388, %v1387
          %v1431 = vpack.c.b16 %v1390, %v1389
          %v1432 = vpack.c.b16 %v1392, %v1391
          %v1433 = vpack.c.b16 %v1394, %v1393
          %v1434 = vpack.c.b16 %v1396, %v1395
          %v1435 = vpack.c.b16 %v1398, %v1397
          %v1436 = vpack.c.b16 %v1400, %v1399
          %v1437 = vpack.c.b16 %v1402, %v1401
          %v1438 = vpack.c.b16 %v1404, %v1403
          %v1439 = vpack.c.b16 %v1406, %v1405
          %v1440 = vpack.c.b16 %v1408, %v1407
          %1473 = vmatprep.subr.bf16.mxu0 0
          %1474 = vmatpush1.bf16.msra.mxu0 %v1409
          %1475 = vmatprep.subr.bf16.mxu0 0
          %1476 = vmatpush1.bf16.msra.mxu0 %v1410
          %1477 = vmatprep.subr.bf16.mxu0 0
          %1478 = vmatpush1.bf16.msra.mxu0 %v1411
          %1479 = vmatprep.subr.bf16.mxu0 0
          %1480 = vmatpush1.bf16.msra.mxu0 %v1412
          %1481 = vmatprep.subr.bf16.mxu0 0
          %1482 = vmatpush1.bf16.msra.mxu0 %v1413
          %1483 = vmatprep.subr.bf16.mxu0 0
          %1484 = vmatpush1.bf16.msra.mxu0 %v1414
          %1485 = vmatprep.subr.bf16.mxu0 0
          %1486 = vmatpush1.bf16.msra.mxu0 %v1415
          %1487 = vmatprep.subr.bf16.mxu0 0
          %1488 = vmatpush1.bf16.msra.mxu0 %v1416
          %1489 = vmatprep.subr.bf16.mxu0 0
          %1490 = vmatpush1.bf16.msra.mxu0 %v1417
          %1491 = vmatprep.subr.bf16.mxu0 0
          %1492 = vmatpush1.bf16.msra.mxu0 %v1418
          %1493 = vmatprep.subr.bf16.mxu0 0
          %1494 = vmatpush1.bf16.msra.mxu0 %v1419
          %1495 = vmatprep.subr.bf16.mxu0 0
          %1496 = vmatpush1.bf16.msra.mxu0 %v1420
          %1497 = vmatprep.subr.bf16.mxu0 0
          %1498 = vmatpush1.bf16.msra.mxu0 %v1421
          %1499 = vmatprep.subr.bf16.mxu0 0
          %1500 = vmatpush1.bf16.msra.mxu0 %v1422
          %1501 = vmatprep.subr.bf16.mxu0 0
          %1502 = vmatpush1.bf16.msra.mxu0 %v1423
          %1503 = vmatprep.subr.bf16.mxu0 0
          %1504 = vmatpush1.bf16.msra.mxu0 %v1424
          %1505 = vmatprep.mubr.bf16.mxu0 %v1026
          %1506 = vmatmul.mubr.bf16.gmra.mrb[0].mxu0 %v1025
          %v1507 = vpop.f32.mrb[0].mxu0
          %v1508 = vadd.f32 0.0, %v1507
          %v1509 = vpop.f32.mrb[0].mxu0
          %v1510 = vpop.f32.mrb[0].mxu0
          %v1511 = vadd.f32 0.0, %v1510
          %v1512 = vpop.f32.mrb[0].mxu0
          %1513 = vmatprep.mubr.bf16.mxu0 %v1030
          %1514 = vmatmul.mubr.bf16.gmra.mrb[0].mxu0 %v1029
          %v1515 = vpop.f32.mrb[0].mxu0
          %v1516 = vadd.f32 0.0, %v1515
          %v1517 = vpop.f32.mrb[0].mxu0
          %v1518 = vpop.f32.mrb[0].mxu0
          %v1519 = vadd.f32 0.0, %v1518
          %v1520 = vpop.f32.mrb[0].mxu0
          %1521 = vmatprep.mubr.bf16.mxu0 %v1034
          %1522 = vmatmul.mubr.bf16.gmra.mrb[0].mxu0 %v1033
          %v1523 = vpop.f32.mrb[0].mxu0
          %v1524 = vadd.f32 0.0, %v1523
          %v1525 = vpop.f32.mrb[0].mxu0
          %v1526 = vpop.f32.mrb[0].mxu0
          %v1527 = vadd.f32 0.0, %v1526
          %v1528 = vpop.f32.mrb[0].mxu0
          %1529 = vmatprep.mubr.bf16.mxu0 %v1038
          %1530 = vmatmul.mubr.bf16.gmra.mrb[0].mxu0 %v1037
          %v1531 = vpop.f32.mrb[0].mxu0
          %v1532 = vadd.f32 0.0, %v1531
          %v1533 = vpop.f32.mrb[0].mxu0
          %v1534 = vpop.f32.mrb[0].mxu0
          %v1535 = vadd.f32 0.0, %v1534
          %v1536 = vpop.f32.mrb[0].mxu0
          %1537 = vmatprep.mubr.bf16.mxu0 %v1042
          %1538 = vmatmul.mubr.bf16.gmra.mrb[0].mxu0 %v1041
          %v1539 = vpop.f32.mrb[0].mxu0
          %v1540 = vadd.f32 0.0, %v1539
          %v1541 = vpop.f32.mrb[0].mxu0
          %v1542 = vpop.f32.mrb[0].mxu0
          %v1543 = vadd.f32 0.0, %v1542
          %v1544 = vpop.f32.mrb[0].mxu0
          %1545 = vmatprep.mubr.bf16.mxu0 %v1046
          %1546 = vmatmul.mubr.bf16.gmra.mrb[0].mxu0 %v1045
          %v1547 = vpop.f32.mrb[0].mxu0
          %v1548 = vadd.f32 0.0, %v1547
          %v1549 = vpop.f32.mrb[0].mxu0
          %v1550 = vpop.f32.mrb[0].mxu0
          %v1551 = vadd.f32 0.0, %v1550
          %v1552 = vpop.f32.mrb[0].mxu0
          %1553 = vmatprep.mubr.bf16.mxu0 %v1050
          %1554 = vmatmul.mubr.bf16.gmra.mrb[0].mxu0 %v1049
          %v1555 = vpop.f32.mrb[0].mxu0
          %v1556 = vadd.f32 0.0, %v1555
          %v1557 = vpop.f32.mrb[0].mxu0
          %v1558 = vpop.f32.mrb[0].mxu0
          %v1559 = vadd.f32 0.0, %v1558
          %v1560 = vpop.f32.mrb[0].mxu0
          %1561 = vmatprep.mubr.bf16.mxu0 %v1054
          %1562 = vmatmul.mubr.bf16.gmra.mrb[0].mxu0 %v1053
          %v1563 = vpop.f32.mrb[0].mxu0
          %v1564 = vadd.f32 0.0, %v1563
          %v1565 = vpop.f32.mrb[0].mxu0
          %v1566 = vpop.f32.mrb[0].mxu0
          %v1567 = vadd.f32 0.0, %v1566
          %v1568 = vpop.f32.mrb[0].mxu0
          %1569 = vmatprep.mubr.bf16.mxu0 %v1058
          %1570 = vmatmul.mubr.bf16.gmra.mrb[0].mxu0 %v1057
          %v1571 = vpop.f32.mrb[0].mxu0
          %v1572 = vadd.f32 0.0, %v1571
          %v1573 = vpop.f32.mrb[0].mxu0
          %v1574 = vpop.f32.mrb[0].mxu0
          %v1575 = vadd.f32 0.0, %v1574
          %v1576 = vpop.f32.mrb[0].mxu0
          %1577 = vmatprep.mubr.bf16.mxu0 %v1062
          %1578 = vmatmul.mubr.bf16.gmra.mrb[0].mxu0 %v1061
          %v1579 = vpop.f32.mrb[0].mxu0
          %v1580 = vadd.f32 0.0, %v1579
          %v1581 = vpop.f32.mrb[0].mxu0
          %v1582 = vpop.f32.mrb[0].mxu0
          %v1583 = vadd.f32 0.0, %v1582
          %v1584 = vpop.f32.mrb[0].mxu0
          %1585 = vmatprep.mubr.bf16.mxu0 %v1066
          %1586 = vmatmul.mubr.bf16.gmra.mrb[0].mxu0 %v1065
          %v1587 = vpop.f32.mrb[0].mxu0
          %v1588 = vadd.f32 0.0, %v1587
          %v1589 = vpop.f32.mrb[0].mxu0
          %v1590 = vpop.f32.mrb[0].mxu0
          %v1591 = vadd.f32 0.0, %v1590
          %v1592 = vpop.f32.mrb[0].mxu0
          %1593 = vmatprep.mubr.bf16.mxu0 %v1070
          %1594 = vmatmul.mubr.bf16.gmra.mrb[0].mxu0 %v1069
          %v1595 = vpop.f32.mrb[0].mxu0
          %v1596 = vadd.f32 0.0, %v1595
          %v1597 = vpop.f32.mrb[0].mxu0
          %v1598 = vpop.f32.mrb[0].mxu0
          %v1599 = vadd.f32 0.0, %v1598
          %v1600 = vpop.f32.mrb[0].mxu0
          %1601 = vmatprep.mubr.bf16.mxu0 %v1074
          %1602 = vmatmul.mubr.bf16.gmra.mrb[0].mxu0 %v1073
          %v1603 = vpop.f32.mrb[0].mxu0
          %v1604 = vadd.f32 0.0, %v1603
          %v1605 = vpop.f32.mrb[0].mxu0
          %v1606 = vpop.f32.mrb[0].mxu0
          %v1607 = vadd.f32 0.0, %v1606
          %v1608 = vpop.f32.mrb[0].mxu0
          %1609 = vmatprep.mubr.bf16.mxu0 %v1078
          %1610 = vmatmul.mubr.bf16.gmra.mrb[0].mxu0 %v1077
          %v1611 = vpop.f32.mrb[0].mxu0
          %v1612 = vadd.f32 0.0, %v1611
          %v1613 = vpop.f32.mrb[0].mxu0
          %v1614 = vpop.f32.mrb[0].mxu0
          %v1615 = vadd.f32 0.0, %v1614
          %v1616 = vpop.f32.mrb[0].mxu0
          %1617 = vmatprep.mubr.bf16.mxu0 %v1082
          %1618 = vmatmul.mubr.bf16.gmra.mrb[0].mxu0 %v1081
          %v1619 = vpop.f32.mrb[0].mxu0
          %v1620 = vadd.f32 0.0, %v1619
          %v1621 = vpop.f32.mrb[0].mxu0
          %v1622 = vpop.f32.mrb[0].mxu0
          %v1623 = vadd.f32 0.0, %v1622
          %v1624 = vpop.f32.mrb[0].mxu0
          %1625 = vmatprep.mubr.bf16.mxu0 %v1086
          %1626 = vmatmul.mubr.bf16.gmra.mrb[0].mxu0 %v1085
          %v1627 = vpop.f32.mrb[0].mxu0
          %v1628 = vadd.f32 0.0, %v1627
          %v1629 = vpop.f32.mrb[0].mxu0
          %v1630 = vpop.f32.mrb[0].mxu0
          %v1631 = vadd.f32 0.0, %v1630
          %v1632 = vpop.f32.mrb[0].mxu0
          %1633 = vmatprep.mubr.bf16.mxu0 %v1090
          %1634 = vmatmul.mubr.bf16.gmra.mrb[0].mxu0 %v1089
          %v1635 = vpop.f32.mrb[0].mxu0
          %v1636 = vadd.f32 0.0, %v1635
          %v1637 = vpop.f32.mrb[0].mxu0
          %v1638 = vpop.f32.mrb[0].mxu0
          %v1639 = vadd.f32 0.0, %v1638
          %v1640 = vpop.f32.mrb[0].mxu0
          %1641 = vmatprep.mubr.bf16.mxu0 %v1094
          %1642 = vmatmul.mubr.bf16.gmra.mrb[0].mxu0 %v1093
          %v1643 = vpop.f32.mrb[0].mxu0
          %v1644 = vadd.f32 0.0, %v1643
          %v1645 = vpop.f32.mrb[0].mxu0
          %v1646 = vpop.f32.mrb[0].mxu0
          %v1647 = vadd.f32 0.0, %v1646
          %v1648 = vpop.f32.mrb[0].mxu0
          %1649 = vmatprep.mubr.bf16.mxu0 %v1098
          %1650 = vmatmul.mubr.bf16.gmra.mrb[0].mxu0 %v1097
          %v1651 = vpop.f32.mrb[0].mxu0
          %v1652 = vadd.f32 0.0, %v1651
          %v1653 = vpop.f32.mrb[0].mxu0
          %v1654 = vpop.f32.mrb[0].mxu0
          %v1655 = vadd.f32 0.0, %v1654
          %v1656 = vpop.f32.mrb[0].mxu0
          %1657 = vmatprep.mubr.bf16.mxu0 %v1102
          %1658 = vmatmul.mubr.bf16.gmra.mrb[0].mxu0 %v1101
          %v1659 = vpop.f32.mrb[0].mxu0
          %v1660 = vadd.f32 0.0, %v1659
          %v1661 = vpop.f32.mrb[0].mxu0
          %v1662 = vpop.f32.mrb[0].mxu0
          %v1663 = vadd.f32 0.0, %v1662
          %v1664 = vpop.f32.mrb[0].mxu0
          %1665 = vmatprep.mubr.bf16.mxu0 %v1106
          %1666 = vmatmul.mubr.bf16.gmra.mrb[0].mxu0 %v1105
          %v1667 = vpop.f32.mrb[0].mxu0
          %v1668 = vadd.f32 0.0, %v1667
          %v1669 = vpop.f32.mrb[0].mxu0
          %v1670 = vpop.f32.mrb[0].mxu0
          %v1671 = vadd.f32 0.0, %v1670
          %v1672 = vpop.f32.mrb[0].mxu0
          %1673 = vmatprep.mubr.bf16.mxu0 %v1110
          %1674 = vmatmul.mubr.bf16.gmra.mrb[0].mxu0 %v1109
          %v1675 = vpop.f32.mrb[0].mxu0
          %v1676 = vadd.f32 0.0, %v1675
          %v1677 = vpop.f32.mrb[0].mxu0
          %v1678 = vpop.f32.mrb[0].mxu0
          %v1679 = vadd.f32 0.0, %v1678
          %v1680 = vpop.f32.mrb[0].mxu0
          %1681 = vmatprep.mubr.bf16.mxu0 %v1114
          %1682 = vmatmul.mubr.bf16.gmra.mrb[0].mxu0 %v1113
          %v1683 = vpop.f32.mrb[0].mxu0
          %v1684 = vadd.f32 0.0, %v1683
          %v1685 = vpop.f32.mrb[0].mxu0
          %v1686 = vpop.f32.mrb[0].mxu0
          %v1687 = vadd.f32 0.0, %v1686
          %v1688 = vpop.f32.mrb[0].mxu0
          %1689 = vmatprep.mubr.bf16.mxu0 %v1118
          %1690 = vmatmul.mubr.bf16.gmra.mrb[0].mxu0 %v1117
          %v1691 = vpop.f32.mrb[0].mxu0
          %v1692 = vadd.f32 0.0, %v1691
          %v1693 = vpop.f32.mrb[0].mxu0
          %v1694 = vpop.f32.mrb[0].mxu0
          %v1695 = vadd.f32 0.0, %v1694
          %v1696 = vpop.f32.mrb[0].mxu0
          %1697 = vmatprep.mubr.bf16.mxu0 %v1122
          %1698 = vmatmul.mubr.bf16.gmra.mrb[0].mxu0 %v1121
          %v1699 = vpop.f32.mrb[0].mxu0
          %v1700 = vadd.f32 0.0, %v1699
          %v1701 = vpop.f32.mrb[0].mxu0
          %v1702 = vpop.f32.mrb[0].mxu0
          %v1703 = vadd.f32 0.0, %v1702
          %v1704 = vpop.f32.mrb[0].mxu0
          %1705 = vmatprep.mubr.bf16.mxu0 %v1126
          %1706 = vmatmul.mubr.bf16.gmra.mrb[0].mxu0 %v1125
          %v1707 = vpop.f32.mrb[0].mxu0
          %v1708 = vadd.f32 0.0, %v1707
          %v1709 = vpop.f32.mrb[0].mxu0
          %v1710 = vpop.f32.mrb[0].mxu0
          %v1711 = vadd.f32 0.0, %v1710
          %v1712 = vpop.f32.mrb[0].mxu0
          %1713 = vmatprep.mubr.bf16.mxu0 %v1130
          %1714 = vmatmul.mubr.bf16.gmra.mrb[0].mxu0 %v1129
          %v1715 = vpop.f32.mrb[0].mxu0
          %v1716 = vadd.f32 0.0, %v1715
          %v1717 = vpop.f32.mrb[0].mxu0
          %v1718 = vpop.f32.mrb[0].mxu0
          %v1719 = vadd.f32 0.0, %v1718
          %v1720 = vpop.f32.mrb[0].mxu0
          %1721 = vmatprep.mubr.bf16.mxu0 %v1134
          %1722 = vmatmul.mubr.bf16.gmra.mrb[0].mxu0 %v1133
          %v1723 = vpop.f32.mrb[0].mxu0
          %v1724 = vadd.f32 0.0, %v1723
          %v1725 = vpop.f32.mrb[0].mxu0
          %v1726 = vpop.f32.mrb[0].mxu0
          %v1727 = vadd.f32 0.0, %v1726
          %v1728 = vpop.f32.mrb[0].mxu0
          %1729 = vmatprep.mubr.bf16.mxu0 %v1138
          %1730 = vmatmul.mubr.bf16.gmra.mrb[0].mxu0 %v1137
          %v1731 = vpop.f32.mrb[0].mxu0
          %v1732 = vadd.f32 0.0, %v1731
          %v1733 = vpop.f32.mrb[0].mxu0
          %v1734 = vpop.f32.mrb[0].mxu0
          %v1735 = vadd.f32 0.0, %v1734
          %v1736 = vpop.f32.mrb[0].mxu0
          %1737 = vmatprep.mubr.bf16.mxu0 %v1142
          %1738 = vmatmul.mubr.bf16.gmra.mrb[0].mxu0 %v1141
          %v1739 = vpop.f32.mrb[0].mxu0
          %v1740 = vadd.f32 0.0, %v1739
          %v1741 = vpop.f32.mrb[0].mxu0
          %v1742 = vpop.f32.mrb[0].mxu0
          %v1743 = vadd.f32 0.0, %v1742
          %v1744 = vpop.f32.mrb[0].mxu0
          %1745 = vmatprep.mubr.bf16.mxu0 %v1146
          %1746 = vmatmul.mubr.bf16.gmra.mrb[0].mxu0 %v1145
          %v1747 = vpop.f32.mrb[0].mxu0
          %v1748 = vadd.f32 0.0, %v1747
          %v1749 = vpop.f32.mrb[0].mxu0
          %v1750 = vpop.f32.mrb[0].mxu0
          %v1751 = vadd.f32 0.0, %v1750
          %v1752 = vpop.f32.mrb[0].mxu0
          %1753 = vmatprep.mubr.bf16.mxu0 %v1150
          %1754 = vmatmul.mubr.bf16.gmra.mrb[0].mxu0 %v1149
          %v1755 = vpop.f32.mrb[0].mxu0
          %v1756 = vadd.f32 0.0, %v1755
          %v1757 = vpop.f32.mrb[0].mxu0
          %v1758 = vpop.f32.mrb[0].mxu0
          %v1759 = vadd.f32 0.0, %v1758
          %v1760 = vpop.f32.mrb[0].mxu0
          %1761 = vdwg.mxu0
          %1762 = vmatprep.subr.bf16.mxu0 0
          %1763 = vmatpush1.bf16.msra.mxu0 %v1425
          %1764 = vmatprep.subr.bf16.mxu0 0
          %1765 = vmatpush1.bf16.msra.mxu0 %v1426
          %1766 = vmatprep.subr.bf16.mxu0 0
          %1767 = vmatpush1.bf16.msra.mxu0 %v1427
          %1768 = vmatprep.subr.bf16.mxu0 0
          %1769 = vmatpush1.bf16.msra.mxu0 %v1428
          %1770 = vmatprep.subr.bf16.mxu0 0
          %1771 = vmatpush1.bf16.msra.mxu0 %v1429
          %1772 = vmatprep.subr.bf16.mxu0 0
          %1773 = vmatpush1.bf16.msra.mxu0 %v1430
          %1774 = vmatprep.subr.bf16.mxu0 0
          %1775 = vmatpush1.bf16.msra.mxu0 %v1431
          %1776 = vmatprep.subr.bf16.mxu0 0
          %1777 = vmatpush1.bf16.msra.mxu0 %v1432
          %1778 = vmatprep.subr.bf16.mxu0 0
          %1779 = vmatpush1.bf16.msra.mxu0 %v1433
          %1780 = vmatprep.subr.bf16.mxu0 0
          %1781 = vmatpush1.bf16.msra.mxu0 %v1434
          %1782 = vmatprep.subr.bf16.mxu0 0
          %1783 = vmatpush1.bf16.msra.mxu0 %v1435
          %1784 = vmatprep.subr.bf16.mxu0 0
          %1785 = vmatpush1.bf16.msra.mxu0 %v1436
          %1786 = vmatprep.subr.bf16.mxu0 0
          %1787 = vmatpush1.bf16.msra.mxu0 %v1437
          %1788 = vmatprep.subr.bf16.mxu0 0
          %1789 = vmatpush1.bf16.msra.mxu0 %v1438
          %1790 = vmatprep.subr.bf16.mxu0 0
          %1791 = vmatpush1.bf16.msra.mxu0 %v1439
          %1792 = vmatprep.subr.bf16.mxu0 0
          %1793 = vmatpush1.bf16.msra.mxu0 %v1440
          %1794 = vmatprep.mubr.bf16.mxu0 %v1028
          %1795 = vmatmul.mubr.bf16.gmra.mrb[0].mxu0 %v1027
          %v1796 = vpop.f32.mrb[0].mxu0
          %v1797 = vadd.f32 %v1508, %v1796
          %v1798 = vpop.f32.mrb[0].mxu0
          %v1799 = vpop.f32.mrb[0].mxu0
          %v1800 = vadd.f32 %v1511, %v1799
          %v1801 = vpop.f32.mrb[0].mxu0
          %1802 = vmatprep.mubr.bf16.mxu0 %v1032
          %1803 = vmatmul.mubr.bf16.gmra.mrb[0].mxu0 %v1031
          %v1804 = vpop.f32.mrb[0].mxu0
          %v1805 = vadd.f32 %v1516, %v1804
          %v1806 = vpop.f32.mrb[0].mxu0
          %v1807 = vpop.f32.mrb[0].mxu0
          %v1808 = vadd.f32 %v1519, %v1807
          %v1809 = vpop.f32.mrb[0].mxu0
          %1810 = vmatprep.mubr.bf16.mxu0 %v1036
          %1811 = vmatmul.mubr.bf16.gmra.mrb[0].mxu0 %v1035
          %v1812 = vpop.f32.mrb[0].mxu0
          %v1813 = vadd.f32 %v1524, %v1812
          %v1814 = vpop.f32.mrb[0].mxu0
          %v1815 = vpop.f32.mrb[0].mxu0
          %v1816 = vadd.f32 %v1527, %v1815
          %v1817 = vpop.f32.mrb[0].mxu0
          %1818 = vmatprep.mubr.bf16.mxu0 %v1040
          %1819 = vmatmul.mubr.bf16.gmra.mrb[0].mxu0 %v1039
          %v1820 = vpop.f32.mrb[0].mxu0
          %v1821 = vadd.f32 %v1532, %v1820
          %v1822 = vpop.f32.mrb[0].mxu0
          %v1823 = vpop.f32.mrb[0].mxu0
          %v1824 = vadd.f32 %v1535, %v1823
          %v1825 = vpop.f32.mrb[0].mxu0
          %1826 = vmatprep.mubr.bf16.mxu0 %v1044
          %1827 = vmatmul.mubr.bf16.gmra.mrb[0].mxu0 %v1043
          %v1828 = vpop.f32.mrb[0].mxu0
          %v1829 = vadd.f32 %v1540, %v1828
          %v1830 = vpop.f32.mrb[0].mxu0
          %v1831 = vpop.f32.mrb[0].mxu0
          %v1832 = vadd.f32 %v1543, %v1831
          %v1833 = vpop.f32.mrb[0].mxu0
          %1834 = vmatprep.mubr.bf16.mxu0 %v1048
          %1835 = vmatmul.mubr.bf16.gmra.mrb[0].mxu0 %v1047
          %v1836 = vpop.f32.mrb[0].mxu0
          %v1837 = vadd.f32 %v1548, %v1836
          %v1838 = vpop.f32.mrb[0].mxu0
          %v1839 = vpop.f32.mrb[0].mxu0
          %v1840 = vadd.f32 %v1551, %v1839
          %v1841 = vpop.f32.mrb[0].mxu0
          %1842 = vmatprep.mubr.bf16.mxu0 %v1052
          %1843 = vmatmul.mubr.bf16.gmra.mrb[0].mxu0 %v1051
          %v1844 = vpop.f32.mrb[0].mxu0
          %v1845 = vadd.f32 %v1556, %v1844
          %v1846 = vpop.f32.mrb[0].mxu0
          %v1847 = vpop.f32.mrb[0].mxu0
          %v1848 = vadd.f32 %v1559, %v1847
          %v1849 = vpop.f32.mrb[0].mxu0
          %1850 = vmatprep.mubr.bf16.mxu0 %v1056
          %1851 = vmatmul.mubr.bf16.gmra.mrb[0].mxu0 %v1055
          %v1852 = vpop.f32.mrb[0].mxu0
          %v1853 = vadd.f32 %v1564, %v1852
          %v1854 = vpop.f32.mrb[0].mxu0
          %v1855 = vpop.f32.mrb[0].mxu0
          %v1856 = vadd.f32 %v1567, %v1855
          %v1857 = vpop.f32.mrb[0].mxu0
          %1858 = vmatprep.mubr.bf16.mxu0 %v1060
          %1859 = vmatmul.mubr.bf16.gmra.mrb[0].mxu0 %v1059
          %v1860 = vpop.f32.mrb[0].mxu0
          %v1861 = vadd.f32 %v1572, %v1860
          %v1862 = vpop.f32.mrb[0].mxu0
          %v1863 = vpop.f32.mrb[0].mxu0
          %v1864 = vadd.f32 %v1575, %v1863
          %v1865 = vpop.f32.mrb[0].mxu0
          %1866 = vmatprep.mubr.bf16.mxu0 %v1064
          %1867 = vmatmul.mubr.bf16.gmra.mrb[0].mxu0 %v1063
          %v1868 = vpop.f32.mrb[0].mxu0
          %v1869 = vadd.f32 %v1580, %v1868
          %v1870 = vpop.f32.mrb[0].mxu0
          %v1871 = vpop.f32.mrb[0].mxu0
          %v1872 = vadd.f32 %v1583, %v1871
          %v1873 = vpop.f32.mrb[0].mxu0
          %1874 = vmatprep.mubr.bf16.mxu0 %v1068
          %1875 = vmatmul.mubr.bf16.gmra.mrb[0].mxu0 %v1067
          %v1876 = vpop.f32.mrb[0].mxu0
          %v1877 = vadd.f32 %v1588, %v1876
          %v1878 = vpop.f32.mrb[0].mxu0
          %v1879 = vpop.f32.mrb[0].mxu0
          %v1880 = vadd.f32 %v1591, %v1879
          %v1881 = vpop.f32.mrb[0].mxu0
          %1882 = vmatprep.mubr.bf16.mxu0 %v1072
          %1883 = vmatmul.mubr.bf16.gmra.mrb[0].mxu0 %v1071
          %v1884 = vpop.f32.mrb[0].mxu0
          %v1885 = vadd.f32 %v1596, %v1884
          %v1886 = vpop.f32.mrb[0].mxu0
          %v1887 = vpop.f32.mrb[0].mxu0
          %v1888 = vadd.f32 %v1599, %v1887
          %v1889 = vpop.f32.mrb[0].mxu0
          %1890 = vmatprep.mubr.bf16.mxu0 %v1076
          %1891 = vmatmul.mubr.bf16.gmra.mrb[0].mxu0 %v1075
          %v1892 = vpop.f32.mrb[0].mxu0
          %v1893 = vadd.f32 %v1604, %v1892
          %v1894 = vpop.f32.mrb[0].mxu0
          %v1895 = vpop.f32.mrb[0].mxu0
          %v1896 = vadd.f32 %v1607, %v1895
          %v1897 = vpop.f32.mrb[0].mxu0
          %1898 = vmatprep.mubr.bf16.mxu0 %v1080
          %1899 = vmatmul.mubr.bf16.gmra.mrb[0].mxu0 %v1079
          %v1900 = vpop.f32.mrb[0].mxu0
          %v1901 = vadd.f32 %v1612, %v1900
          %v1902 = vpop.f32.mrb[0].mxu0
          %v1903 = vpop.f32.mrb[0].mxu0
          %v1904 = vadd.f32 %v1615, %v1903
          %v1905 = vpop.f32.mrb[0].mxu0
          %1906 = vmatprep.mubr.bf16.mxu0 %v1084
          %1907 = vmatmul.mubr.bf16.gmra.mrb[0].mxu0 %v1083
          %v1908 = vpop.f32.mrb[0].mxu0
          %v1909 = vadd.f32 %v1620, %v1908
          %v1910 = vpop.f32.mrb[0].mxu0
          %v1911 = vpop.f32.mrb[0].mxu0
          %v1912 = vadd.f32 %v1623, %v1911
          %v1913 = vpop.f32.mrb[0].mxu0
          %1914 = vmatprep.mubr.bf16.mxu0 %v1088
          %1915 = vmatmul.mubr.bf16.gmra.mrb[0].mxu0 %v1087
          %v1916 = vpop.f32.mrb[0].mxu0
          %v1917 = vadd.f32 %v1628, %v1916
          %v1918 = vpop.f32.mrb[0].mxu0
          %v1919 = vpop.f32.mrb[0].mxu0
          %v1920 = vadd.f32 %v1631, %v1919
          %v1921 = vpop.f32.mrb[0].mxu0
          %1922 = vmatprep.mubr.bf16.mxu0 %v1092
          %1923 = vmatmul.mubr.bf16.gmra.mrb[0].mxu0 %v1091
          %v1924 = vpop.f32.mrb[0].mxu0
          %v1925 = vadd.f32 %v1636, %v1924
          %v1926 = vpop.f32.mrb[0].mxu0
          %v1927 = vpop.f32.mrb[0].mxu0
          %v1928 = vadd.f32 %v1639, %v1927
          %v1929 = vpop.f32.mrb[0].mxu0
          %1930 = vmatprep.mubr.bf16.mxu0 %v1096
          %1931 = vmatmul.mubr.bf16.gmra.mrb[0].mxu0 %v1095
          %v1932 = vpop.f32.mrb[0].mxu0
          %v1933 = vadd.f32 %v1644, %v1932
          %v1934 = vpop.f32.mrb[0].mxu0
          %v1935 = vpop.f32.mrb[0].mxu0
          %v1936 = vadd.f32 %v1647, %v1935
          %v1937 = vpop.f32.mrb[0].mxu0
          %1938 = vmatprep.mubr.bf16.mxu0 %v1100
          %1939 = vmatmul.mubr.bf16.gmra.mrb[0].mxu0 %v1099
          %v1940 = vpop.f32.mrb[0].mxu0
          %v1941 = vadd.f32 %v1652, %v1940
          %v1942 = vpop.f32.mrb[0].mxu0
          %v1943 = vpop.f32.mrb[0].mxu0
          %v1944 = vadd.f32 %v1655, %v1943
          %v1945 = vpop.f32.mrb[0].mxu0
          %1946 = vmatprep.mubr.bf16.mxu0 %v1104
          %1947 = vmatmul.mubr.bf16.gmra.mrb[0].mxu0 %v1103
          %v1948 = vpop.f32.mrb[0].mxu0
          %v1949 = vadd.f32 %v1660, %v1948
          %v1950 = vpop.f32.mrb[0].mxu0
          %v1951 = vpop.f32.mrb[0].mxu0
          %v1952 = vadd.f32 %v1663, %v1951
          %v1953 = vpop.f32.mrb[0].mxu0
          %1954 = vmatprep.mubr.bf16.mxu0 %v1108
          %1955 = vmatmul.mubr.bf16.gmra.mrb[0].mxu0 %v1107
          %v1956 = vpop.f32.mrb[0].mxu0
          %v1957 = vadd.f32 %v1668, %v1956
          %v1958 = vpop.f32.mrb[0].mxu0
          %v1959 = vpop.f32.mrb[0].mxu0
          %v1960 = vadd.f32 %v1671, %v1959
          %v1961 = vpop.f32.mrb[0].mxu0
          %1962 = vmatprep.mubr.bf16.mxu0 %v1112
          %1963 = vmatmul.mubr.bf16.gmra.mrb[0].mxu0 %v1111
          %v1964 = vpop.f32.mrb[0].mxu0
          %v1965 = vadd.f32 %v1676, %v1964
          %v1966 = vpop.f32.mrb[0].mxu0
          %v1967 = vpop.f32.mrb[0].mxu0
          %v1968 = vadd.f32 %v1679, %v1967
          %v1969 = vpop.f32.mrb[0].mxu0
          %1970 = vmatprep.mubr.bf16.mxu0 %v1116
          %1971 = vmatmul.mubr.bf16.gmra.mrb[0].mxu0 %v1115
          %v1972 = vpop.f32.mrb[0].mxu0
          %v1973 = vadd.f32 %v1684, %v1972
          %v1974 = vpop.f32.mrb[0].mxu0
          %v1975 = vpop.f32.mrb[0].mxu0
          %v1976 = vadd.f32 %v1687, %v1975
          %v1977 = vpop.f32.mrb[0].mxu0
          %1978 = vmatprep.mubr.bf16.mxu0 %v1120
          %1979 = vmatmul.mubr.bf16.gmra.mrb[0].mxu0 %v1119
          %v1980 = vpop.f32.mrb[0].mxu0
          %v1981 = vadd.f32 %v1692, %v1980
          %v1982 = vpop.f32.mrb[0].mxu0
          %v1983 = vpop.f32.mrb[0].mxu0
          %v1984 = vadd.f32 %v1695, %v1983
          %v1985 = vpop.f32.mrb[0].mxu0
          %1986 = vmatprep.mubr.bf16.mxu0 %v1124
          %1987 = vmatmul.mubr.bf16.gmra.mrb[0].mxu0 %v1123
          %v1988 = vpop.f32.mrb[0].mxu0
          %v1989 = vadd.f32 %v1700, %v1988
          %v1990 = vpop.f32.mrb[0].mxu0
          %v1991 = vpop.f32.mrb[0].mxu0
          %v1992 = vadd.f32 %v1703, %v1991
          %v1993 = vpop.f32.mrb[0].mxu0
          %1994 = vmatprep.mubr.bf16.mxu0 %v1128
          %1995 = vmatmul.mubr.bf16.gmra.mrb[0].mxu0 %v1127
          %v1996 = vpop.f32.mrb[0].mxu0
          %v1997 = vadd.f32 %v1708, %v1996
          %v1998 = vpop.f32.mrb[0].mxu0
          %v1999 = vpop.f32.mrb[0].mxu0
          %v2000 = vadd.f32 %v1711, %v1999
          %v2001 = vpop.f32.mrb[0].mxu0
          %2002 = vmatprep.mubr.bf16.mxu0 %v1132
          %2003 = vmatmul.mubr.bf16.gmra.mrb[0].mxu0 %v1131
          %v2004 = vpop.f32.mrb[0].mxu0
          %v2005 = vadd.f32 %v1716, %v2004
          %v2006 = vpop.f32.mrb[0].mxu0
          %v2007 = vpop.f32.mrb[0].mxu0
          %v2008 = vadd.f32 %v1719, %v2007
          %v2009 = vpop.f32.mrb[0].mxu0
          %2010 = vmatprep.mubr.bf16.mxu0 %v1136
          %2011 = vmatmul.mubr.bf16.gmra.mrb[0].mxu0 %v1135
          %v2012 = vpop.f32.mrb[0].mxu0
          %v2013 = vadd.f32 %v1724, %v2012
          %v2014 = vpop.f32.mrb[0].mxu0
          %v2015 = vpop.f32.mrb[0].mxu0
          %v2016 = vadd.f32 %v1727, %v2015
          %v2017 = vpop.f32.mrb[0].mxu0
          %2018 = vmatprep.mubr.bf16.mxu0 %v1140
          %2019 = vmatmul.mubr.bf16.gmra.mrb[0].mxu0 %v1139
          %v2020 = vpop.f32.mrb[0].mxu0
          %v2021 = vadd.f32 %v1732, %v2020
          %v2022 = vpop.f32.mrb[0].mxu0
          %v2023 = vpop.f32.mrb[0].mxu0
          %v2024 = vadd.f32 %v1735, %v2023
          %v2025 = vpop.f32.mrb[0].mxu0
          %2026 = vmatprep.mubr.bf16.mxu0 %v1144
          %2027 = vmatmul.mubr.bf16.gmra.mrb[0].mxu0 %v1143
          %v2028 = vpop.f32.mrb[0].mxu0
          %v2029 = vadd.f32 %v1740, %v2028
          %v2030 = vpop.f32.mrb[0].mxu0
          %v2031 = vpop.f32.mrb[0].mxu0
          %v2032 = vadd.f32 %v1743, %v2031
          %v2033 = vpop.f32.mrb[0].mxu0
          %2034 = vmatprep.mubr.bf16.mxu0 %v1148
          %2035 = vmatmul.mubr.bf16.gmra.mrb[0].mxu0 %v1147
          %v2036 = vpop.f32.mrb[0].mxu0
          %v2037 = vadd.f32 %v1748, %v2036
          %v2038 = vpop.f32.mrb[0].mxu0
          %v2039 = vpop.f32.mrb[0].mxu0
          %v2040 = vadd.f32 %v1751, %v2039
          %v2041 = vpop.f32.mrb[0].mxu0
          %2042 = vmatprep.mubr.bf16.mxu0 %v1152
          %2043 = vmatmul.mubr.bf16.gmra.mrb[0].mxu0 %v1151
          %v2044 = vpop.f32.mrb[0].mxu0
          %v2045 = vadd.f32 %v1756, %v2044
          %v2046 = vpop.f32.mrb[0].mxu0
          %v2047 = vpop.f32.mrb[0].mxu0
          %v2048 = vadd.f32 %v1759, %v2047
          %v2049 = vpop.f32.mrb[0].mxu0
          %2050 = vdwg.mxu0
          %v2051 = vadd.f32 %v385, %v1797
          %v2052 = vadd.f32 %v386, %v1800
          %v2053 = vadd.f32 %v387, %v1805
          %v2054 = vadd.f32 %v388, %v1808
          %v2055 = vadd.f32 %v389, %v1813
          %v2056 = vadd.f32 %v390, %v1816
          %v2057 = vadd.f32 %v391, %v1821
          %v2058 = vadd.f32 %v392, %v1824
          %v2059 = vadd.f32 %v393, %v1829
          %v2060 = vadd.f32 %v394, %v1832
          %v2061 = vadd.f32 %v395, %v1837
          %v2062 = vadd.f32 %v396, %v1840
          %v2063 = vadd.f32 %v397, %v1845
          %v2064 = vadd.f32 %v398, %v1848
          %v2065 = vadd.f32 %v399, %v1853
          %v2066 = vadd.f32 %v400, %v1856
          %v2067 = vadd.f32 %v401, %v1861
          %v2068 = vadd.f32 %v402, %v1864
          %v2069 = vadd.f32 %v403, %v1869
          %v2070 = vadd.f32 %v404, %v1872
          %v2071 = vadd.f32 %v405, %v1877
          %v2072 = vadd.f32 %v406, %v1880
          %v2073 = vadd.f32 %v407, %v1885
          %v2074 = vadd.f32 %v408, %v1888
          %v2075 = vadd.f32 %v409, %v1893
          %v2076 = vadd.f32 %v410, %v1896
          %v2077 = vadd.f32 %v411, %v1901
          %v2078 = vadd.f32 %v412, %v1904
          %v2079 = vadd.f32 %v413, %v1909
          %v2080 = vadd.f32 %v414, %v1912
          %v2081 = vadd.f32 %v415, %v1917
          %v2082 = vadd.f32 %v416, %v1920
          %v2083 = vadd.f32 %v417, %v1925
          %v2084 = vadd.f32 %v418, %v1928
          %v2085 = vadd.f32 %v419, %v1933
          %v2086 = vadd.f32 %v420, %v1936
          %v2087 = vadd.f32 %v421, %v1941
          %v2088 = vadd.f32 %v422, %v1944
          %v2089 = vadd.f32 %v423, %v1949
          %v2090 = vadd.f32 %v424, %v1952
          %v2091 = vadd.f32 %v425, %v1957
          %v2092 = vadd.f32 %v426, %v1960
          %v2093 = vadd.f32 %v427, %v1965
          %v2094 = vadd.f32 %v428, %v1968
          %v2095 = vadd.f32 %v429, %v1973
          %v2096 = vadd.f32 %v430, %v1976
          %v2097 = vadd.f32 %v431, %v1981
          %v2098 = vadd.f32 %v432, %v1984
          %v2099 = vadd.f32 %v433, %v1989
          %v2100 = vadd.f32 %v434, %v1992
          %v2101 = vadd.f32 %v435, %v1997
          %v2102 = vadd.f32 %v436, %v2000
          %v2103 = vadd.f32 %v437, %v2005
          %v2104 = vadd.f32 %v438, %v2008
          %v2105 = vadd.f32 %v439, %v2013
          %v2106 = vadd.f32 %v440, %v2016
          %v2107 = vadd.f32 %v441, %v2021
          %v2108 = vadd.f32 %v442, %v2024
          %v2109 = vadd.f32 %v443, %v2029
          %v2110 = vadd.f32 %v444, %v2032
          %v2111 = vadd.f32 %v445, %v2037
          %v2112 = vadd.f32 %v446, %v2040
          %v2113 = vadd.f32 %v447, %v2045
          %v2114 = vadd.f32 %v448, %v2048
          %2115 = vst [vmem:[#allocation2] sm:$0xff] %v2051
          %2116 = vst [vmem:[#allocation2 + $0x8] sm:$0xff] %v2052
          %2117 = vst [vmem:[#allocation2 + $0x10] sm:$0xff] %v2053
          %2118 = vst [vmem:[#allocation2 + $0x18] sm:$0xff] %v2054
          %2119 = vst [vmem:[#allocation2 + $0x20] sm:$0xff] %v2055
          %2120 = vst [vmem:[#allocation2 + $0x28] sm:$0xff] %v2056
          %2121 = vst [vmem:[#allocation2 + $0x30] sm:$0xff] %v2057
          %2122 = vst [vmem:[#allocation2 + $0x38] sm:$0xff] %v2058
          %2123 = vst [vmem:[#allocation2 + $0x40] sm:$0xff] %v2059
          %2124 = vst [vmem:[#allocation2 + $0x48] sm:$0xff] %v2060
          %2125 = vst [vmem:[#allocation2 + $0x50] sm:$0xff] %v2061
          %2126 = vst [vmem:[#allocation2 + $0x58] sm:$0xff] %v2062
          %2127 = vst [vmem:[#allocation2 + $0x60] sm:$0xff] %v2063
          %2128 = vst [vmem:[#allocation2 + $0x68] sm:$0xff] %v2064
          %2129 = vst [vmem:[#allocation2 + $0x70] sm:$0xff] %v2065
          %2130 = vst [vmem:[#allocation2 + $0x78] sm:$0xff] %v2066
          %2131 = vst [vmem:[#allocation2 + $0x80] sm:$0xff] %v2067
          %2132 = vst [vmem:[#allocation2 + $0x88] sm:$0xff] %v2068
          %2133 = vst [vmem:[#allocation2 + $0x90] sm:$0xff] %v2069
          %2134 = vst [vmem:[#allocation2 + $0x98] sm:$0xff] %v2070
          %2135 = vst [vmem:[#allocation2 + $0xa0] sm:$0xff] %v2071
          %2136 = vst [vmem:[#allocation2 + $0xa8] sm:$0xff] %v2072
          %2137 = vst [vmem:[#allocation2 + $0xb0] sm:$0xff] %v2073
          %2138 = vst [vmem:[#allocation2 + $0xb8] sm:$0xff] %v2074
          %2139 = vst [vmem:[#allocation2 + $0xc0] sm:$0xff] %v2075
          %2140 = vst [vmem:[#allocation2 + $0xc8] sm:$0xff] %v2076
          %2141 = vst [vmem:[#allocation2 + $0xd0] sm:$0xff] %v2077
          %2142 = vst [vmem:[#allocation2 + $0xd8] sm:$0xff] %v2078
          %2143 = vst [vmem:[#allocation2 + $0xe0] sm:$0xff] %v2079
          %2144 = vst [vmem:[#allocation2 + $0xe8] sm:$0xff] %v2080
          %2145 = vst [vmem:[#allocation2 + $0xf0] sm:$0xff] %v2081
          %2146 = vst [vmem:[#allocation2 + $0xf8] sm:$0xff] %v2082
          %2147 = vst [vmem:[#allocation2 + $0x100] sm:$0xff] %v2083
          %2148 = vst [vmem:[#allocation2 + $0x108] sm:$0xff] %v2084
          %2149 = vst [vmem:[#allocation2 + $0x110] sm:$0xff] %v2085
          %2150 = vst [vmem:[#allocation2 + $0x118] sm:$0xff] %v2086
          %2151 = vst [vmem:[#allocation2 + $0x120] sm:$0xff] %v2087
          %2152 = vst [vmem:[#allocation2 + $0x128] sm:$0xff] %v2088
          %2153 = vst [vmem:[#allocation2 + $0x130] sm:$0xff] %v2089
          %2154 = vst [vmem:[#allocation2 + $0x138] sm:$0xff] %v2090
          %2155 = vst [vmem:[#allocation2 + $0x140] sm:$0xff] %v2091
          %2156 = vst [vmem:[#allocation2 + $0x148] sm:$0xff] %v2092
          %2157 = vst [vmem:[#allocation2 + $0x150] sm:$0xff] %v2093
          %2158 = vst [vmem:[#allocation2 + $0x158] sm:$0xff] %v2094
          %2159 = vst [vmem:[#allocation2 + $0x160] sm:$0xff] %v2095
          %2160 = vst [vmem:[#allocation2 + $0x168] sm:$0xff] %v2096
          %2161 = vst [vmem:[#allocation2 + $0x170] sm:$0xff] %v2097
          %2162 = vst [vmem:[#allocation2 + $0x178] sm:$0xff] %v2098
          %2163 = vst [vmem:[#allocation2 + $0x180] sm:$0xff] %v2099
          %2164 = vst [vmem:[#allocation2 + $0x188] sm:$0xff] %v2100
          %2165 = vst [vmem:[#allocation2 + $0x190] sm:$0xff] %v2101
          %2166 = vst [vmem:[#allocation2 + $0x198] sm:$0xff] %v2102
          %2167 = vst [vmem:[#allocation2 + $0x1a0] sm:$0xff] %v2103
          %2168 = vst [vmem:[#allocation2 + $0x1a8] sm:$0xff] %v2104
          %2169 = vst [vmem:[#allocation2 + $0x1b0] sm:$0xff] %v2105
          %2170 = vst [vmem:[#allocation2 + $0x1b8] sm:$0xff] %v2106
          %2171 = vst [vmem:[#allocation2 + $0x1c0] sm:$0xff] %v2107
          %2172 = vst [vmem:[#allocation2 + $0x1c8] sm:$0xff] %v2108
          %2173 = vst [vmem:[#allocation2 + $0x1d0] sm:$0xff] %v2109
          %2174 = vst [vmem:[#allocation2 + $0x1d8] sm:$0xff] %v2110
          %2175 = vst [vmem:[#allocation2 + $0x1e0] sm:$0xff] %v2111
          %2176 = vst [vmem:[#allocation2 + $0x1e8] sm:$0xff] %v2112
          %2177 = vst [vmem:[#allocation2 + $0x1f0] sm:$0xff] %v2113
          %2178 = vst [vmem:[#allocation2 + $0x1f8] sm:$0xff] %v2114
        $region60: #{tpu_custom_call.1} parent=35 // pred_fallthru
          _
        %p2179 = scmp.eq.s32.totalorder %s35, 1
        // Predicated region
        $region61: #{tpu_custom_call.1} parent=35 // pred_check
          %p2180 = pneg %p2179
        $region62: #{tpu_custom_call.1} parent=35 // pred_check_branch
          %2182 = sbr.rel (%p2180) target = $region64
        $region63: #{tpu_custom_call.1} parent=35 // pred_region
          %v2183 = vld [vmem:[#allocation2] sm:$0xff]
          %v2184 = vld [vmem:[#allocation2 + $0x8] sm:$0xff]
          %v2185 = vld [vmem:[#allocation2 + $0x10] sm:$0xff]
          %v2186 = vld [vmem:[#allocation2 + $0x18] sm:$0xff]
          %v2187 = vld [vmem:[#allocation2 + $0x20] sm:$0xff]
          %v2188 = vld [vmem:[#allocation2 + $0x28] sm:$0xff]
          %v2189 = vld [vmem:[#allocation2 + $0x30] sm:$0xff]
          %v2190 = vld [vmem:[#allocation2 + $0x38] sm:$0xff]
          %v2191 = vld [vmem:[#allocation2 + $0x40] sm:$0xff]
          %v2192 = vld [vmem:[#allocation2 + $0x48] sm:$0xff]
          %v2193 = vld [vmem:[#allocation2 + $0x50] sm:$0xff]
          %v2194 = vld [vmem:[#allocation2 + $0x58] sm:$0xff]
          %v2195 = vld [vmem:[#allocation2 + $0x60] sm:$0xff]
          %v2196 = vld [vmem:[#allocation2 + $0x68] sm:$0xff]
          %v2197 = vld [vmem:[#allocation2 + $0x70] sm:$0xff]
          %v2198 = vld [vmem:[#allocation2 + $0x78] sm:$0xff]
          %v2199 = vld [vmem:[#allocation2 + $0x80] sm:$0xff]
          %v2200 = vld [vmem:[#allocation2 + $0x88] sm:$0xff]
          %v2201 = vld [vmem:[#allocation2 + $0x90] sm:$0xff]
          %v2202 = vld [vmem:[#allocation2 + $0x98] sm:$0xff]
          %v2203 = vld [vmem:[#allocation2 + $0xa0] sm:$0xff]
          %v2204 = vld [vmem:[#allocation2 + $0xa8] sm:$0xff]
          %v2205 = vld [vmem:[#allocation2 + $0xb0] sm:$0xff]
          %v2206 = vld [vmem:[#allocation2 + $0xb8] sm:$0xff]
          %v2207 = vld [vmem:[#allocation2 + $0xc0] sm:$0xff]
          %v2208 = vld [vmem:[#allocation2 + $0xc8] sm:$0xff]
          %v2209 = vld [vmem:[#allocation2 + $0xd0] sm:$0xff]
          %v2210 = vld [vmem:[#allocation2 + $0xd8] sm:$0xff]
          %v2211 = vld [vmem:[#allocation2 + $0xe0] sm:$0xff]
          %v2212 = vld [vmem:[#allocation2 + $0xe8] sm:$0xff]
          %v2213 = vld [vmem:[#allocation2 + $0xf0] sm:$0xff]
          %v2214 = vld [vmem:[#allocation2 + $0xf8] sm:$0xff]
          %v2215 = vld [vmem:[#allocation2 + $0x100] sm:$0xff]
          %v2216 = vld [vmem:[#allocation2 + $0x108] sm:$0xff]
          %v2217 = vld [vmem:[#allocation2 + $0x110] sm:$0xff]
          %v2218 = vld [vmem:[#allocation2 + $0x118] sm:$0xff]
          %v2219 = vld [vmem:[#allocation2 + $0x120] sm:$0xff]
          %v2220 = vld [vmem:[#allocation2 + $0x128] sm:$0xff]
          %v2221 = vld [vmem:[#allocation2 + $0x130] sm:$0xff]
          %v2222 = vld [vmem:[#allocation2 + $0x138] sm:$0xff]
          %v2223 = vld [vmem:[#allocation2 + $0x140] sm:$0xff]
          %v2224 = vld [vmem:[#allocation2 + $0x148] sm:$0xff]
          %v2225 = vld [vmem:[#allocation2 + $0x150] sm:$0xff]
          %v2226 = vld [vmem:[#allocation2 + $0x158] sm:$0xff]
          %v2227 = vld [vmem:[#allocation2 + $0x160] sm:$0xff]
          %v2228 = vld [vmem:[#allocation2 + $0x168] sm:$0xff]
          %v2229 = vld [vmem:[#allocation2 + $0x170] sm:$0xff]
          %v2230 = vld [vmem:[#allocation2 + $0x178] sm:$0xff]
          %v2231 = vld [vmem:[#allocation2 + $0x180] sm:$0xff]
          %v2232 = vld [vmem:[#allocation2 + $0x188] sm:$0xff]
          %v2233 = vld [vmem:[#allocation2 + $0x190] sm:$0xff]
          %v2234 = vld [vmem:[#allocation2 + $0x198] sm:$0xff]
          %v2235 = vld [vmem:[#allocation2 + $0x1a0] sm:$0xff]
          %v2236 = vld [vmem:[#allocation2 + $0x1a8] sm:$0xff]
          %v2237 = vld [vmem:[#allocation2 + $0x1b0] sm:$0xff]
          %v2238 = vld [vmem:[#allocation2 + $0x1b8] sm:$0xff]
          %v2239 = vld [vmem:[#allocation2 + $0x1c0] sm:$0xff]
          %v2240 = vld [vmem:[#allocation2 + $0x1c8] sm:$0xff]
          %v2241 = vld [vmem:[#allocation2 + $0x1d0] sm:$0xff]
          %v2242 = vld [vmem:[#allocation2 + $0x1d8] sm:$0xff]
          %v2243 = vld [vmem:[#allocation2 + $0x1e0] sm:$0xff]
          %v2244 = vld [vmem:[#allocation2 + $0x1e8] sm:$0xff]
          %v2245 = vld [vmem:[#allocation2 + $0x1f0] sm:$0xff]
          %v2246 = vld [vmem:[#allocation2 + $0x1f8] sm:$0xff]
          %v2247 = vpack.c.bf16 %v2184, %v2183
          %v2248 = vpack.c.bf16 %v2186, %v2185
          %v2249 = vpack.c.bf16 %v2188, %v2187
          %v2250 = vpack.c.bf16 %v2190, %v2189
          %v2251 = vpack.c.bf16 %v2192, %v2191
          %v2252 = vpack.c.bf16 %v2194, %v2193
          %v2253 = vpack.c.bf16 %v2196, %v2195
          %v2254 = vpack.c.bf16 %v2198, %v2197
          %v2255 = vpack.c.bf16 %v2200, %v2199
          %v2256 = vpack.c.bf16 %v2202, %v2201
          %v2257 = vpack.c.bf16 %v2204, %v2203
          %v2258 = vpack.c.bf16 %v2206, %v2205
          %v2259 = vpack.c.bf16 %v2208, %v2207
          %v2260 = vpack.c.bf16 %v2210, %v2209
          %v2261 = vpack.c.bf16 %v2212, %v2211
          %v2262 = vpack.c.bf16 %v2214, %v2213
          %v2263 = vpack.c.bf16 %v2216, %v2215
          %v2264 = vpack.c.bf16 %v2218, %v2217
          %v2265 = vpack.c.bf16 %v2220, %v2219
          %v2266 = vpack.c.bf16 %v2222, %v2221
          %v2267 = vpack.c.bf16 %v2224, %v2223
          %v2268 = vpack.c.bf16 %v2226, %v2225
          %v2269 = vpack.c.bf16 %v2228, %v2227
          %v2270 = vpack.c.bf16 %v2230, %v2229
          %v2271 = vpack.c.bf16 %v2232, %v2231
          %v2272 = vpack.c.bf16 %v2234, %v2233
          %v2273 = vpack.c.bf16 %v2236, %v2235
          %v2274 = vpack.c.bf16 %v2238, %v2237
          %v2275 = vpack.c.bf16 %v2240, %v2239
          %v2276 = vpack.c.bf16 %v2242, %v2241
          %v2277 = vpack.c.bf16 %v2244, %v2243
          %v2278 = vpack.c.bf16 %v2246, %v2245
          %v2279 = vld [vmem:[#allocation10] sm:$0xf]
          %v2280 = vld [vmem:[#allocation10 + $0x4] sm:$0xf]
          %v2281 = vld [vmem:[#allocation10 + $0x8] sm:$0xf]
          %v2282 = vld [vmem:[#allocation10 + $0xc] sm:$0xf]
          %v2283 = vld [vmem:[#allocation10 + $0x10] sm:$0xf]
          %v2284 = vld [vmem:[#allocation10 + $0x14] sm:$0xf]
          %v2285 = vld [vmem:[#allocation10 + $0x18] sm:$0xf]
          %v2286 = vld [vmem:[#allocation10 + $0x1c] sm:$0xf]
          %v2287 = vld [vmem:[#allocation10 + $0x20] sm:$0xf]
          %v2288 = vld [vmem:[#allocation10 + $0x24] sm:$0xf]
          %v2289 = vld [vmem:[#allocation10 + $0x28] sm:$0xf]
          %v2290 = vld [vmem:[#allocation10 + $0x2c] sm:$0xf]
          %v2291 = vld [vmem:[#allocation10 + $0x30] sm:$0xf]
          %v2292 = vld [vmem:[#allocation10 + $0x34] sm:$0xf]
          %v2293 = vld [vmem:[#allocation10 + $0x38] sm:$0xf]
          %v2294 = vld [vmem:[#allocation10 + $0x3c] sm:$0xf]
          %v2295 = vld [vmem:[#allocation11] sm:$0x1]
          %v2297 = vlaneseq
          %v2298 = vshrl.u32 %v2297, 7
          %v2299 = vsub.s32 0, %v2298
          %v2300 = vrot.slane %v2295, %v2299
          %v2318 = vunpack.c.l.b16 %v2279
          %v2319 = vunpack.c.l.b16 %v2280
          %v2320 = vunpack.c.l.b16 %v2281
          %v2321 = vunpack.c.l.b16 %v2282
          %v2322 = vunpack.c.l.b16 %v2283
          %v2323 = vunpack.c.l.b16 %v2284
          %v2324 = vunpack.c.l.b16 %v2285
          %v2325 = vunpack.c.l.b16 %v2286
          %v2326 = vunpack.c.l.b16 %v2287
          %v2327 = vunpack.c.l.b16 %v2288
          %v2328 = vunpack.c.l.b16 %v2289
          %v2329 = vunpack.c.l.b16 %v2290
          %v2330 = vunpack.c.l.b16 %v2291
          %v2331 = vunpack.c.l.b16 %v2292
          %v2332 = vunpack.c.l.b16 %v2293
          %v2333 = vunpack.c.l.b16 %v2294
          %v2334 = vpack.c.b16 %v2319, %v2318
          %v2335 = vpack.c.b16 %v2321, %v2320
          %v2336 = vpack.c.b16 %v2323, %v2322
          %v2337 = vpack.c.b16 %v2325, %v2324
          %v2338 = vpack.c.b16 %v2327, %v2326
          %v2339 = vpack.c.b16 %v2329, %v2328
          %v2340 = vpack.c.b16 %v2331, %v2330
          %v2341 = vpack.c.b16 %v2333, %v2332
          %2350 = vmatprep.subr.bf16.mxu0 0
          %2351 = vmatpush1.bf16.msra.mxu0 %v2334
          %2352 = vmatprep.subr.bf16.mxu0 0
          %2353 = vmatpush1.bf16.msra.mxu0 %v2335
          %2354 = vmatprep.subr.bf16.mxu0 0
          %2355 = vmatpush1.bf16.msra.mxu0 %v2336
          %2356 = vmatprep.subr.bf16.mxu0 0
          %2357 = vmatpush1.bf16.msra.mxu0 %v2337
          %2358 = vmatprep.subr.bf16.mxu0 0
          %2359 = vmatpush1.bf16.msra.mxu0 %v2338
          %2360 = vmatprep.subr.bf16.mxu0 0
          %2361 = vmatpush1.bf16.msra.mxu0 %v2339
          %2362 = vmatprep.subr.bf16.mxu0 0
          %2363 = vmatpush1.bf16.msra.mxu0 %v2340
          %2364 = vmatprep.subr.bf16.mxu0 0
          %2365 = vmatpush1.bf16.msra.mxu0 %v2341
          %2366 = vmatprep.subr.bf16.mxu0 0
          %2367 = vmatpush1.bf16.msra.mxu0 0
          %2368 = vmatprep.subr.bf16.mxu0 0
          %2369 = vmatpush1.bf16.msra.mxu0 0
          %2370 = vmatprep.subr.bf16.mxu0 0
          %2371 = vmatpush1.bf16.msra.mxu0 0
          %2372 = vmatprep.subr.bf16.mxu0 0
          %2373 = vmatpush1.bf16.msra.mxu0 0
          %2374 = vmatprep.subr.bf16.mxu0 0
          %2375 = vmatpush1.bf16.msra.mxu0 0
          %2376 = vmatprep.subr.bf16.mxu0 0
          %2377 = vmatpush1.bf16.msra.mxu0 0
          %2378 = vmatprep.subr.bf16.mxu0 0
          %2379 = vmatpush1.bf16.msra.mxu0 0
          %2380 = vmatprep.subr.bf16.mxu0 0
          %2381 = vmatpush1.bf16.msra.mxu0 0
          %2382 = vmatprep.mubr.bf16.mxu0 0
          %2383 = vmatmul.mubr.bf16.gmra.mrb[0].mxu0 %v2247
          %v2384 = vpop.f32.mrb[0].mxu0
          %v2385 = vadd.f32 %v2300, %v2384
          %v2386 = vpop.f32.mrb[0].mxu0
          %v2387 = vpop.f32.mrb[0].mxu0
          %v2388 = vadd.f32 %v2300, %v2387
          %v2389 = vpop.f32.mrb[0].mxu0
          %2390 = vmatprep.mubr.bf16.mxu0 0
          %2391 = vmatmul.mubr.bf16.gmra.mrb[0].mxu0 %v2248
          %v2392 = vpop.f32.mrb[0].mxu0
          %v2393 = vadd.f32 %v2300, %v2392
          %v2394 = vpop.f32.mrb[0].mxu0
          %v2395 = vpop.f32.mrb[0].mxu0
          %v2396 = vadd.f32 %v2300, %v2395
          %v2397 = vpop.f32.mrb[0].mxu0
          %2398 = vmatprep.mubr.bf16.mxu0 0
          %2399 = vmatmul.mubr.bf16.gmra.mrb[0].mxu0 %v2249
          %v2400 = vpop.f32.mrb[0].mxu0
          %v2401 = vadd.f32 %v2300, %v2400
          %v2402 = vpop.f32.mrb[0].mxu0
          %v2403 = vpop.f32.mrb[0].mxu0
          %v2404 = vadd.f32 %v2300, %v2403
          %v2405 = vpop.f32.mrb[0].mxu0
          %2406 = vmatprep.mubr.bf16.mxu0 0
          %2407 = vmatmul.mubr.bf16.gmra.mrb[0].mxu0 %v2250
          %v2408 = vpop.f32.mrb[0].mxu0
          %v2409 = vadd.f32 %v2300, %v2408
          %v2410 = vpop.f32.mrb[0].mxu0
          %v2411 = vpop.f32.mrb[0].mxu0
          %v2412 = vadd.f32 %v2300, %v2411
          %v2413 = vpop.f32.mrb[0].mxu0
          %2414 = vmatprep.mubr.bf16.mxu0 0
          %2415 = vmatmul.mubr.bf16.gmra.mrb[0].mxu0 %v2251
          %v2416 = vpop.f32.mrb[0].mxu0
          %v2417 = vadd.f32 %v2300, %v2416
          %v2418 = vpop.f32.mrb[0].mxu0
          %v2419 = vpop.f32.mrb[0].mxu0
          %v2420 = vadd.f32 %v2300, %v2419
          %v2421 = vpop.f32.mrb[0].mxu0
          %2422 = vmatprep.mubr.bf16.mxu0 0
          %2423 = vmatmul.mubr.bf16.gmra.mrb[0].mxu0 %v2252
          %v2424 = vpop.f32.mrb[0].mxu0
          %v2425 = vadd.f32 %v2300, %v2424
          %v2426 = vpop.f32.mrb[0].mxu0
          %v2427 = vpop.f32.mrb[0].mxu0
          %v2428 = vadd.f32 %v2300, %v2427
          %v2429 = vpop.f32.mrb[0].mxu0
          %2430 = vmatprep.mubr.bf16.mxu0 0
          %2431 = vmatmul.mubr.bf16.gmra.mrb[0].mxu0 %v2253
          %v2432 = vpop.f32.mrb[0].mxu0
          %v2433 = vadd.f32 %v2300, %v2432
          %v2434 = vpop.f32.mrb[0].mxu0
          %v2435 = vpop.f32.mrb[0].mxu0
          %v2436 = vadd.f32 %v2300, %v2435
          %v2437 = vpop.f32.mrb[0].mxu0
          %2438 = vmatprep.mubr.bf16.mxu0 0
          %2439 = vmatmul.mubr.bf16.gmra.mrb[0].mxu0 %v2254
          %v2440 = vpop.f32.mrb[0].mxu0
          %v2441 = vadd.f32 %v2300, %v2440
          %v2442 = vpop.f32.mrb[0].mxu0
          %v2443 = vpop.f32.mrb[0].mxu0
          %v2444 = vadd.f32 %v2300, %v2443
          %v2445 = vpop.f32.mrb[0].mxu0
          %2446 = vmatprep.mubr.bf16.mxu0 0
          %2447 = vmatmul.mubr.bf16.gmra.mrb[0].mxu0 %v2255
          %v2448 = vpop.f32.mrb[0].mxu0
          %v2449 = vadd.f32 %v2300, %v2448
          %v2450 = vpop.f32.mrb[0].mxu0
          %v2451 = vpop.f32.mrb[0].mxu0
          %v2452 = vadd.f32 %v2300, %v2451
          %v2453 = vpop.f32.mrb[0].mxu0
          %2454 = vmatprep.mubr.bf16.mxu0 0
          %2455 = vmatmul.mubr.bf16.gmra.mrb[0].mxu0 %v2256
          %v2456 = vpop.f32.mrb[0].mxu0
          %v2457 = vadd.f32 %v2300, %v2456
          %v2458 = vpop.f32.mrb[0].mxu0
          %v2459 = vpop.f32.mrb[0].mxu0
          %v2460 = vadd.f32 %v2300, %v2459
          %v2461 = vpop.f32.mrb[0].mxu0
          %2462 = vmatprep.mubr.bf16.mxu0 0
          %2463 = vmatmul.mubr.bf16.gmra.mrb[0].mxu0 %v2257
          %v2464 = vpop.f32.mrb[0].mxu0
          %v2465 = vadd.f32 %v2300, %v2464
          %v2466 = vpop.f32.mrb[0].mxu0
          %v2467 = vpop.f32.mrb[0].mxu0
          %v2468 = vadd.f32 %v2300, %v2467
          %v2469 = vpop.f32.mrb[0].mxu0
          %2470 = vmatprep.mubr.bf16.mxu0 0
          %2471 = vmatmul.mubr.bf16.gmra.mrb[0].mxu0 %v2258
          %v2472 = vpop.f32.mrb[0].mxu0
          %v2473 = vadd.f32 %v2300, %v2472
          %v2474 = vpop.f32.mrb[0].mxu0
          %v2475 = vpop.f32.mrb[0].mxu0
          %v2476 = vadd.f32 %v2300, %v2475
          %v2477 = vpop.f32.mrb[0].mxu0
          %2478 = vmatprep.mubr.bf16.mxu0 0
          %2479 = vmatmul.mubr.bf16.gmra.mrb[0].mxu0 %v2259
          %v2480 = vpop.f32.mrb[0].mxu0
          %v2481 = vadd.f32 %v2300, %v2480
          %v2482 = vpop.f32.mrb[0].mxu0
          %v2483 = vpop.f32.mrb[0].mxu0
          %v2484 = vadd.f32 %v2300, %v2483
          %v2485 = vpop.f32.mrb[0].mxu0
          %2486 = vmatprep.mubr.bf16.mxu0 0
          %2487 = vmatmul.mubr.bf16.gmra.mrb[0].mxu0 %v2260
          %v2488 = vpop.f32.mrb[0].mxu0
          %v2489 = vadd.f32 %v2300, %v2488
          %v2490 = vpop.f32.mrb[0].mxu0
          %v2491 = vpop.f32.mrb[0].mxu0
          %v2492 = vadd.f32 %v2300, %v2491
          %v2493 = vpop.f32.mrb[0].mxu0
          %2494 = vmatprep.mubr.bf16.mxu0 0
          %2495 = vmatmul.mubr.bf16.gmra.mrb[0].mxu0 %v2261
          %v2496 = vpop.f32.mrb[0].mxu0
          %v2497 = vadd.f32 %v2300, %v2496
          %v2498 = vpop.f32.mrb[0].mxu0
          %v2499 = vpop.f32.mrb[0].mxu0
          %v2500 = vadd.f32 %v2300, %v2499
          %v2501 = vpop.f32.mrb[0].mxu0
          %2502 = vmatprep.mubr.bf16.mxu0 0
          %2503 = vmatmul.mubr.bf16.gmra.mrb[0].mxu0 %v2262
          %v2504 = vpop.f32.mrb[0].mxu0
          %v2505 = vadd.f32 %v2300, %v2504
          %v2506 = vpop.f32.mrb[0].mxu0
          %v2507 = vpop.f32.mrb[0].mxu0
          %v2508 = vadd.f32 %v2300, %v2507
          %v2509 = vpop.f32.mrb[0].mxu0
          %2510 = vmatprep.mubr.bf16.mxu0 0
          %2511 = vmatmul.mubr.bf16.gmra.mrb[0].mxu0 %v2263
          %v2512 = vpop.f32.mrb[0].mxu0
          %v2513 = vadd.f32 %v2300, %v2512
          %v2514 = vpop.f32.mrb[0].mxu0
          %v2515 = vpop.f32.mrb[0].mxu0
          %v2516 = vadd.f32 %v2300, %v2515
          %v2517 = vpop.f32.mrb[0].mxu0
          %2518 = vmatprep.mubr.bf16.mxu0 0
          %2519 = vmatmul.mubr.bf16.gmra.mrb[0].mxu0 %v2264
          %v2520 = vpop.f32.mrb[0].mxu0
          %v2521 = vadd.f32 %v2300, %v2520
          %v2522 = vpop.f32.mrb[0].mxu0
          %v2523 = vpop.f32.mrb[0].mxu0
          %v2524 = vadd.f32 %v2300, %v2523
          %v2525 = vpop.f32.mrb[0].mxu0
          %2526 = vmatprep.mubr.bf16.mxu0 0
          %2527 = vmatmul.mubr.bf16.gmra.mrb[0].mxu0 %v2265
          %v2528 = vpop.f32.mrb[0].mxu0
          %v2529 = vadd.f32 %v2300, %v2528
          %v2530 = vpop.f32.mrb[0].mxu0
          %v2531 = vpop.f32.mrb[0].mxu0
          %v2532 = vadd.f32 %v2300, %v2531
          %v2533 = vpop.f32.mrb[0].mxu0
          %2534 = vmatprep.mubr.bf16.mxu0 0
          %2535 = vmatmul.mubr.bf16.gmra.mrb[0].mxu0 %v2266
          %v2536 = vpop.f32.mrb[0].mxu0
          %v2537 = vadd.f32 %v2300, %v2536
          %v2538 = vpop.f32.mrb[0].mxu0
          %v2539 = vpop.f32.mrb[0].mxu0
          %v2540 = vadd.f32 %v2300, %v2539
          %v2541 = vpop.f32.mrb[0].mxu0
          %2542 = vmatprep.mubr.bf16.mxu0 0
          %2543 = vmatmul.mubr.bf16.gmra.mrb[0].mxu0 %v2267
          %v2544 = vpop.f32.mrb[0].mxu0
          %v2545 = vadd.f32 %v2300, %v2544
          %v2546 = vpop.f32.mrb[0].mxu0
          %v2547 = vpop.f32.mrb[0].mxu0
          %v2548 = vadd.f32 %v2300, %v2547
          %v2549 = vpop.f32.mrb[0].mxu0
          %2550 = vmatprep.mubr.bf16.mxu0 0
          %2551 = vmatmul.mubr.bf16.gmra.mrb[0].mxu0 %v2268
          %v2552 = vpop.f32.mrb[0].mxu0
          %v2553 = vadd.f32 %v2300, %v2552
          %v2554 = vpop.f32.mrb[0].mxu0
          %v2555 = vpop.f32.mrb[0].mxu0
          %v2556 = vadd.f32 %v2300, %v2555
          %v2557 = vpop.f32.mrb[0].mxu0
          %2558 = vmatprep.mubr.bf16.mxu0 0
          %2559 = vmatmul.mubr.bf16.gmra.mrb[0].mxu0 %v2269
          %v2560 = vpop.f32.mrb[0].mxu0
          %v2561 = vadd.f32 %v2300, %v2560
          %v2562 = vpop.f32.mrb[0].mxu0
          %v2563 = vpop.f32.mrb[0].mxu0
          %v2564 = vadd.f32 %v2300, %v2563
          %v2565 = vpop.f32.mrb[0].mxu0
          %2566 = vmatprep.mubr.bf16.mxu0 0
          %2567 = vmatmul.mubr.bf16.gmra.mrb[0].mxu0 %v2270
          %v2568 = vpop.f32.mrb[0].mxu0
          %v2569 = vadd.f32 %v2300, %v2568
          %v2570 = vpop.f32.mrb[0].mxu0
          %v2571 = vpop.f32.mrb[0].mxu0
          %v2572 = vadd.f32 %v2300, %v2571
          %v2573 = vpop.f32.mrb[0].mxu0
          %2574 = vmatprep.mubr.bf16.mxu0 0
          %2575 = vmatmul.mubr.bf16.gmra.mrb[0].mxu0 %v2271
          %v2576 = vpop.f32.mrb[0].mxu0
          %v2577 = vadd.f32 %v2300, %v2576
          %v2578 = vpop.f32.mrb[0].mxu0
          %v2579 = vpop.f32.mrb[0].mxu0
          %v2580 = vadd.f32 %v2300, %v2579
          %v2581 = vpop.f32.mrb[0].mxu0
          %2582 = vmatprep.mubr.bf16.mxu0 0
          %2583 = vmatmul.mubr.bf16.gmra.mrb[0].mxu0 %v2272
          %v2584 = vpop.f32.mrb[0].mxu0
          %v2585 = vadd.f32 %v2300, %v2584
          %v2586 = vpop.f32.mrb[0].mxu0
          %v2587 = vpop.f32.mrb[0].mxu0
          %v2588 = vadd.f32 %v2300, %v2587
          %v2589 = vpop.f32.mrb[0].mxu0
          %2590 = vmatprep.mubr.bf16.mxu0 0
          %2591 = vmatmul.mubr.bf16.gmra.mrb[0].mxu0 %v2273
          %v2592 = vpop.f32.mrb[0].mxu0
          %v2593 = vadd.f32 %v2300, %v2592
          %v2594 = vpop.f32.mrb[0].mxu0
          %v2595 = vpop.f32.mrb[0].mxu0
          %v2596 = vadd.f32 %v2300, %v2595
          %v2597 = vpop.f32.mrb[0].mxu0
          %2598 = vmatprep.mubr.bf16.mxu0 0
          %2599 = vmatmul.mubr.bf16.gmra.mrb[0].mxu0 %v2274
          %v2600 = vpop.f32.mrb[0].mxu0
          %v2601 = vadd.f32 %v2300, %v2600
          %v2602 = vpop.f32.mrb[0].mxu0
          %v2603 = vpop.f32.mrb[0].mxu0
          %v2604 = vadd.f32 %v2300, %v2603
          %v2605 = vpop.f32.mrb[0].mxu0
          %2606 = vmatprep.mubr.bf16.mxu0 0
          %2607 = vmatmul.mubr.bf16.gmra.mrb[0].mxu0 %v2275
          %v2608 = vpop.f32.mrb[0].mxu0
          %v2609 = vadd.f32 %v2300, %v2608
          %v2610 = vpop.f32.mrb[0].mxu0
          %v2611 = vpop.f32.mrb[0].mxu0
          %v2612 = vadd.f32 %v2300, %v2611
          %v2613 = vpop.f32.mrb[0].mxu0
          %2614 = vmatprep.mubr.bf16.mxu0 0
          %2615 = vmatmul.mubr.bf16.gmra.mrb[0].mxu0 %v2276
          %v2616 = vpop.f32.mrb[0].mxu0
          %v2617 = vadd.f32 %v2300, %v2616
          %v2618 = vpop.f32.mrb[0].mxu0
          %v2619 = vpop.f32.mrb[0].mxu0
          %v2620 = vadd.f32 %v2300, %v2619
          %v2621 = vpop.f32.mrb[0].mxu0
          %2622 = vmatprep.mubr.bf16.mxu0 0
          %2623 = vmatmul.mubr.bf16.gmra.mrb[0].mxu0 %v2277
          %v2624 = vpop.f32.mrb[0].mxu0
          %v2625 = vadd.f32 %v2300, %v2624
          %v2626 = vpop.f32.mrb[0].mxu0
          %v2627 = vpop.f32.mrb[0].mxu0
          %v2628 = vadd.f32 %v2300, %v2627
          %v2629 = vpop.f32.mrb[0].mxu0
          %2630 = vmatprep.mubr.bf16.mxu0 0
          %2631 = vmatmul.mubr.bf16.gmra.mrb[0].mxu0 %v2278
          %v2632 = vpop.f32.mrb[0].mxu0
          %v2633 = vadd.f32 %v2300, %v2632
          %v2634 = vpop.f32.mrb[0].mxu0
          %v2635 = vpop.f32.mrb[0].mxu0
          %v2636 = vadd.f32 %v2300, %v2635
          %v2637 = vpop.f32.mrb[0].mxu0
          %2638 = vdwg.mxu0
          %v2639 = vmax.f32 %v2385, 0.0
          %v2640 = vmax.f32 %v2388, 0.0
          %v2641 = vmax.f32 %v2393, 0.0
          %v2642 = vmax.f32 %v2396, 0.0
          %v2643 = vmax.f32 %v2401, 0.0
          %v2644 = vmax.f32 %v2404, 0.0
          %v2645 = vmax.f32 %v2409, 0.0
          %v2646 = vmax.f32 %v2412, 0.0
          %v2647 = vmax.f32 %v2417, 0.0
          %v2648 = vmax.f32 %v2420, 0.0
          %v2649 = vmax.f32 %v2425, 0.0
          %v2650 = vmax.f32 %v2428, 0.0
          %v2651 = vmax.f32 %v2433, 0.0
          %v2652 = vmax.f32 %v2436, 0.0
          %v2653 = vmax.f32 %v2441, 0.0
          %v2654 = vmax.f32 %v2444, 0.0
          %v2655 = vmax.f32 %v2449, 0.0
          %v2656 = vmax.f32 %v2452, 0.0
          %v2657 = vmax.f32 %v2457, 0.0
          %v2658 = vmax.f32 %v2460, 0.0
          %v2659 = vmax.f32 %v2465, 0.0
          %v2660 = vmax.f32 %v2468, 0.0
          %v2661 = vmax.f32 %v2473, 0.0
          %v2662 = vmax.f32 %v2476, 0.0
          %v2663 = vmax.f32 %v2481, 0.0
          %v2664 = vmax.f32 %v2484, 0.0
          %v2665 = vmax.f32 %v2489, 0.0
          %v2666 = vmax.f32 %v2492, 0.0
          %v2667 = vmax.f32 %v2497, 0.0
          %v2668 = vmax.f32 %v2500, 0.0
          %v2669 = vmax.f32 %v2505, 0.0
          %v2670 = vmax.f32 %v2508, 0.0
          %v2671 = vmax.f32 %v2513, 0.0
          %v2672 = vmax.f32 %v2516, 0.0
          %v2673 = vmax.f32 %v2521, 0.0
          %v2674 = vmax.f32 %v2524, 0.0
          %v2675 = vmax.f32 %v2529, 0.0
          %v2676 = vmax.f32 %v2532, 0.0
          %v2677 = vmax.f32 %v2537, 0.0
          %v2678 = vmax.f32 %v2540, 0.0
          %v2679 = vmax.f32 %v2545, 0.0
          %v2680 = vmax.f32 %v2548, 0.0
          %v2681 = vmax.f32 %v2553, 0.0
          %v2682 = vmax.f32 %v2556, 0.0
          %v2683 = vmax.f32 %v2561, 0.0
          %v2684 = vmax.f32 %v2564, 0.0
          %v2685 = vmax.f32 %v2569, 0.0
          %v2686 = vmax.f32 %v2572, 0.0
          %v2687 = vmax.f32 %v2577, 0.0
          %v2688 = vmax.f32 %v2580, 0.0
          %v2689 = vmax.f32 %v2585, 0.0
          %v2690 = vmax.f32 %v2588, 0.0
          %v2691 = vmax.f32 %v2593, 0.0
          %v2692 = vmax.f32 %v2596, 0.0
          %v2693 = vmax.f32 %v2601, 0.0
          %v2694 = vmax.f32 %v2604, 0.0
          %v2695 = vmax.f32 %v2609, 0.0
          %v2696 = vmax.f32 %v2612, 0.0
          %v2697 = vmax.f32 %v2617, 0.0
          %v2698 = vmax.f32 %v2620, 0.0
          %v2699 = vmax.f32 %v2625, 0.0
          %v2700 = vmax.f32 %v2628, 0.0
          %v2701 = vmax.f32 %v2633, 0.0
          %v2702 = vmax.f32 %v2636, 0.0
          %v2703 = vpack.c.bf16 %v2640, %v2639
          %v2704 = vpack.c.bf16 %v2642, %v2641
          %v2705 = vpack.c.bf16 %v2644, %v2643
          %v2706 = vpack.c.bf16 %v2646, %v2645
          %v2707 = vpack.c.bf16 %v2648, %v2647
          %v2708 = vpack.c.bf16 %v2650, %v2649
          %v2709 = vpack.c.bf16 %v2652, %v2651
          %v2710 = vpack.c.bf16 %v2654, %v2653
          %v2711 = vpack.c.bf16 %v2656, %v2655
          %v2712 = vpack.c.bf16 %v2658, %v2657
          %v2713 = vpack.c.bf16 %v2660, %v2659
          %v2714 = vpack.c.bf16 %v2662, %v2661
          %v2715 = vpack.c.bf16 %v2664, %v2663
          %v2716 = vpack.c.bf16 %v2666, %v2665
          %v2717 = vpack.c.bf16 %v2668, %v2667
          %v2718 = vpack.c.bf16 %v2670, %v2669
          %v2719 = vpack.c.bf16 %v2672, %v2671
          %v2720 = vpack.c.bf16 %v2674, %v2673
          %v2721 = vpack.c.bf16 %v2676, %v2675
          %v2722 = vpack.c.bf16 %v2678, %v2677
          %v2723 = vpack.c.bf16 %v2680, %v2679
          %v2724 = vpack.c.bf16 %v2682, %v2681
          %v2725 = vpack.c.bf16 %v2684, %v2683
          %v2726 = vpack.c.bf16 %v2686, %v2685
          %v2727 = vpack.c.bf16 %v2688, %v2687
          %v2728 = vpack.c.bf16 %v2690, %v2689
          %v2729 = vpack.c.bf16 %v2692, %v2691
          %v2730 = vpack.c.bf16 %v2694, %v2693
          %v2731 = vpack.c.bf16 %v2696, %v2695
          %v2732 = vpack.c.bf16 %v2698, %v2697
          %v2733 = vpack.c.bf16 %v2700, %v2699
          %v2734 = vpack.c.bf16 %v2702, %v2701
          %v2767 = vunpack.c.l.b16 %v2703
          %v2768 = vunpack.c.h.b16 %v2703
          %v2769 = vunpack.c.l.b16 %v2704
          %v2770 = vunpack.c.h.b16 %v2704
          %v2771 = vunpack.c.l.b16 %v2705
          %v2772 = vunpack.c.h.b16 %v2705
          %v2773 = vunpack.c.l.b16 %v2706
          %v2774 = vunpack.c.h.b16 %v2706
          %v2775 = vunpack.c.l.b16 %v2707
          %v2776 = vunpack.c.h.b16 %v2707
          %v2777 = vunpack.c.l.b16 %v2708
          %v2778 = vunpack.c.h.b16 %v2708
          %v2779 = vunpack.c.l.b16 %v2709
          %v2780 = vunpack.c.h.b16 %v2709
          %v2781 = vunpack.c.l.b16 %v2710
          %v2782 = vunpack.c.h.b16 %v2710
          %v2783 = vunpack.c.l.b16 %v2711
          %v2784 = vunpack.c.h.b16 %v2711
          %v2785 = vunpack.c.l.b16 %v2712
          %v2786 = vunpack.c.h.b16 %v2712
          %v2787 = vunpack.c.l.b16 %v2713
          %v2788 = vunpack.c.h.b16 %v2713
          %v2789 = vunpack.c.l.b16 %v2714
          %v2790 = vunpack.c.h.b16 %v2714
          %v2791 = vunpack.c.l.b16 %v2715
          %v2792 = vunpack.c.h.b16 %v2715
          %v2793 = vunpack.c.l.b16 %v2716
          %v2794 = vunpack.c.h.b16 %v2716
          %v2795 = vunpack.c.l.b16 %v2717
          %v2796 = vunpack.c.h.b16 %v2717
          %v2797 = vunpack.c.l.b16 %v2718
          %v2798 = vunpack.c.h.b16 %v2718
          %v2799 = vunpack.c.l.b16 %v2719
          %v2800 = vunpack.c.h.b16 %v2719
          %v2801 = vunpack.c.l.b16 %v2720
          %v2802 = vunpack.c.h.b16 %v2720
          %v2803 = vunpack.c.l.b16 %v2721
          %v2804 = vunpack.c.h.b16 %v2721
          %v2805 = vunpack.c.l.b16 %v2722
          %v2806 = vunpack.c.h.b16 %v2722
          %v2807 = vunpack.c.l.b16 %v2723
          %v2808 = vunpack.c.h.b16 %v2723
          %v2809 = vunpack.c.l.b16 %v2724
          %v2810 = vunpack.c.h.b16 %v2724
          %v2811 = vunpack.c.l.b16 %v2725
          %v2812 = vunpack.c.h.b16 %v2725
          %v2813 = vunpack.c.l.b16 %v2726
          %v2814 = vunpack.c.h.b16 %v2726
          %v2815 = vunpack.c.l.b16 %v2727
          %v2816 = vunpack.c.h.b16 %v2727
          %v2817 = vunpack.c.l.b16 %v2728
          %v2818 = vunpack.c.h.b16 %v2728
          %v2819 = vunpack.c.l.b16 %v2729
          %v2820 = vunpack.c.h.b16 %v2729
          %v2821 = vunpack.c.l.b16 %v2730
          %v2822 = vunpack.c.h.b16 %v2730
          %v2823 = vunpack.c.l.b16 %v2731
          %v2824 = vunpack.c.h.b16 %v2731
          %v2825 = vunpack.c.l.b16 %v2732
          %v2826 = vunpack.c.h.b16 %v2732
          %v2827 = vunpack.c.l.b16 %v2733
          %v2828 = vunpack.c.h.b16 %v2733
          %v2829 = vunpack.c.l.b16 %v2734
          %v2830 = vunpack.c.h.b16 %v2734
          %v2831 = vpack.c.b16 %v2767, %v2767
          %v2832 = vpack.c.b16 %v2768, %v2768
          %v2833 = vpack.c.b16 %v2769, %v2769
          %v2834 = vpack.c.b16 %v2770, %v2770
          %v2835 = vpack.c.b16 %v2771, %v2771
          %v2836 = vpack.c.b16 %v2772, %v2772
          %v2837 = vpack.c.b16 %v2773, %v2773
          %v2838 = vpack.c.b16 %v2774, %v2774
          %v2839 = vpack.c.b16 %v2775, %v2775
          %v2840 = vpack.c.b16 %v2776, %v2776
          %v2841 = vpack.c.b16 %v2777, %v2777
          %v2842 = vpack.c.b16 %v2778, %v2778
          %v2843 = vpack.c.b16 %v2779, %v2779
          %v2844 = vpack.c.b16 %v2780, %v2780
          %v2845 = vpack.c.b16 %v2781, %v2781
          %v2846 = vpack.c.b16 %v2782, %v2782
          %v2847 = vpack.c.b16 %v2783, %v2783
          %v2848 = vpack.c.b16 %v2784, %v2784
          %v2849 = vpack.c.b16 %v2785, %v2785
          %v2850 = vpack.c.b16 %v2786, %v2786
          %v2851 = vpack.c.b16 %v2787, %v2787
          %v2852 = vpack.c.b16 %v2788, %v2788
          %v2853 = vpack.c.b16 %v2789, %v2789
          %v2854 = vpack.c.b16 %v2790, %v2790
          %v2855 = vpack.c.b16 %v2791, %v2791
          %v2856 = vpack.c.b16 %v2792, %v2792
          %v2857 = vpack.c.b16 %v2793, %v2793
          %v2858 = vpack.c.b16 %v2794, %v2794
          %v2859 = vpack.c.b16 %v2795, %v2795
          %v2860 = vpack.c.b16 %v2796, %v2796
          %v2861 = vpack.c.b16 %v2797, %v2797
          %v2862 = vpack.c.b16 %v2798, %v2798
          %v2863 = vpack.c.b16 %v2799, %v2799
          %v2864 = vpack.c.b16 %v2800, %v2800
          %v2865 = vpack.c.b16 %v2801, %v2801
          %v2866 = vpack.c.b16 %v2802, %v2802
          %v2867 = vpack.c.b16 %v2803, %v2803
          %v2868 = vpack.c.b16 %v2804, %v2804
          %v2869 = vpack.c.b16 %v2805, %v2805
          %v2870 = vpack.c.b16 %v2806, %v2806
          %v2871 = vpack.c.b16 %v2807, %v2807
          %v2872 = vpack.c.b16 %v2808, %v2808
          %v2873 = vpack.c.b16 %v2809, %v2809
          %v2874 = vpack.c.b16 %v2810, %v2810
          %v2875 = vpack.c.b16 %v2811, %v2811
          %v2876 = vpack.c.b16 %v2812, %v2812
          %v2877 = vpack.c.b16 %v2813, %v2813
          %v2878 = vpack.c.b16 %v2814, %v2814
          %v2879 = vpack.c.b16 %v2815, %v2815
          %v2880 = vpack.c.b16 %v2816, %v2816
          %v2881 = vpack.c.b16 %v2817, %v2817
          %v2882 = vpack.c.b16 %v2818, %v2818
          %v2883 = vpack.c.b16 %v2819, %v2819
          %v2884 = vpack.c.b16 %v2820, %v2820
          %v2885 = vpack.c.b16 %v2821, %v2821
          %v2886 = vpack.c.b16 %v2822, %v2822
          %v2887 = vpack.c.b16 %v2823, %v2823
          %v2888 = vpack.c.b16 %v2824, %v2824
          %v2889 = vpack.c.b16 %v2825, %v2825
          %v2890 = vpack.c.b16 %v2826, %v2826
          %v2891 = vpack.c.b16 %v2827, %v2827
          %v2892 = vpack.c.b16 %v2828, %v2828
          %v2893 = vpack.c.b16 %v2829, %v2829
          %v2894 = vpack.c.b16 %v2830, %v2830
          %2959 = vst [vmem:[%s304] sm:$0xf] %v2831
          %2960 = vst [vmem:[%s304 + $0x4] sm:$0xf] %v2832
          %2961 = vst [vmem:[%s304 + $0x8] sm:$0xf] %v2833
          %2962 = vst [vmem:[%s304 + $0xc] sm:$0xf] %v2834
          %2963 = vst [vmem:[%s304 + $0x10] sm:$0xf] %v2835
          %2964 = vst [vmem:[%s304 + $0x14] sm:$0xf] %v2836
          %2965 = vst [vmem:[%s304 + $0x18] sm:$0xf] %v2837
          %2966 = vst [vmem:[%s304 + $0x1c] sm:$0xf] %v2838
          %2967 = vst [vmem:[%s304 + $0x20] sm:$0xf] %v2839
          %2968 = vst [vmem:[%s304 + $0x24] sm:$0xf] %v2840
          %2969 = vst [vmem:[%s304 + $0x28] sm:$0xf] %v2841
          %2970 = vst [vmem:[%s304 + $0x2c] sm:$0xf] %v2842
          %2971 = vst [vmem:[%s304 + $0x30] sm:$0xf] %v2843
          %2972 = vst [vmem:[%s304 + $0x34] sm:$0xf] %v2844
          %2973 = vst [vmem:[%s304 + $0x38] sm:$0xf] %v2845
          %2974 = vst [vmem:[%s304 + $0x3c] sm:$0xf] %v2846
          %2975 = vst [vmem:[%s304 + $0x40] sm:$0xf] %v2847
          %2976 = vst [vmem:[%s304 + $0x44] sm:$0xf] %v2848
          %2977 = vst [vmem:[%s304 + $0x48] sm:$0xf] %v2849
          %2978 = vst [vmem:[%s304 + $0x4c] sm:$0xf] %v2850
          %2979 = vst [vmem:[%s304 + $0x50] sm:$0xf] %v2851
          %2980 = vst [vmem:[%s304 + $0x54] sm:$0xf] %v2852
          %2981 = vst [vmem:[%s304 + $0x58] sm:$0xf] %v2853
          %2982 = vst [vmem:[%s304 + $0x5c] sm:$0xf] %v2854
          %2983 = vst [vmem:[%s304 + $0x60] sm:$0xf] %v2855
          %2984 = vst [vmem:[%s304 + $0x64] sm:$0xf] %v2856
          %2985 = vst [vmem:[%s304 + $0x68] sm:$0xf] %v2857
          %2986 = vst [vmem:[%s304 + $0x6c] sm:$0xf] %v2858
          %2987 = vst [vmem:[%s304 + $0x70] sm:$0xf] %v2859
          %2988 = vst [vmem:[%s304 + $0x74] sm:$0xf] %v2860
          %2989 = vst [vmem:[%s304 + $0x78] sm:$0xf] %v2861
          %2990 = vst [vmem:[%s304 + $0x7c] sm:$0xf] %v2862
          %2991 = vst [vmem:[%s304 + $0x80] sm:$0xf] %v2863
          %2992 = vst [vmem:[%s304 + $0x84] sm:$0xf] %v2864
          %2993 = vst [vmem:[%s304 + $0x88] sm:$0xf] %v2865
          %2994 = vst [vmem:[%s304 + $0x8c] sm:$0xf] %v2866
          %2995 = vst [vmem:[%s304 + $0x90] sm:$0xf] %v2867
          %2996 = vst [vmem:[%s304 + $0x94] sm:$0xf] %v2868
          %2997 = vst [vmem:[%s304 + $0x98] sm:$0xf] %v2869
          %2998 = vst [vmem:[%s304 + $0x9c] sm:$0xf] %v2870
          %2999 = vst [vmem:[%s304 + $0xa0] sm:$0xf] %v2871
          %3000 = vst [vmem:[%s304 + $0xa4] sm:$0xf] %v2872
          %3001 = vst [vmem:[%s304 + $0xa8] sm:$0xf] %v2873
          %3002 = vst [vmem:[%s304 + $0xac] sm:$0xf] %v2874
          %3003 = vst [vmem:[%s304 + $0xb0] sm:$0xf] %v2875
          %3004 = vst [vmem:[%s304 + $0xb4] sm:$0xf] %v2876
          %3005 = vst [vmem:[%s304 + $0xb8] sm:$0xf] %v2877
          %3006 = vst [vmem:[%s304 + $0xbc] sm:$0xf] %v2878
          %3007 = vst [vmem:[%s304 + $0xc0] sm:$0xf] %v2879
          %3008 = vst [vmem:[%s304 + $0xc4] sm:$0xf] %v2880
          %3009 = vst [vmem:[%s304 + $0xc8] sm:$0xf] %v2881
          %3010 = vst [vmem:[%s304 + $0xcc] sm:$0xf] %v2882
          %3011 = vst [vmem:[%s304 + $0xd0] sm:$0xf] %v2883
          %3012 = vst [vmem:[%s304 + $0xd4] sm:$0xf] %v2884
          %3013 = vst [vmem:[%s304 + $0xd8] sm:$0xf] %v2885
          %3014 = vst [vmem:[%s304 + $0xdc] sm:$0xf] %v2886
          %3015 = vst [vmem:[%s304 + $0xe0] sm:$0xf] %v2887
          %3016 = vst [vmem:[%s304 + $0xe4] sm:$0xf] %v2888
          %3017 = vst [vmem:[%s304 + $0xe8] sm:$0xf] %v2889
          %3018 = vst [vmem:[%s304 + $0xec] sm:$0xf] %v2890
          %3019 = vst [vmem:[%s304 + $0xf0] sm:$0xf] %v2891
          %3020 = vst [vmem:[%s304 + $0xf4] sm:$0xf] %v2892
          %3021 = vst [vmem:[%s304 + $0xf8] sm:$0xf] %v2893
          %3022 = vst [vmem:[%s304 + $0xfc] sm:$0xf] %v2894
        $region64: #{tpu_custom_call.1} parent=35 // pred_fallthru
          _
        %s3023 = sand.u32 %s146, 1
        %s3024 = scalar_lea.sflag [#allocation7], %s3023
        %s3025 = sand.u32 %s146, 1
        %s3026 = smul.addr %s3025, 256
        %s3027 = scalar_lea.vmem [#allocation13], %s3026
        // Predicated region
        $region65: #{tpu_custom_call.1} parent=35 // pred_check
          %p3028 = pneg %p156
        $region66: #{tpu_custom_call.1} parent=35 // pred_check_branch
          %3030 = sbr.rel (%p3028) target = $region68
        $region67: #{tpu_custom_call.1} parent=35 // pred_region
          %s3031 = smul.u32 64, %s34
          %s3033 = ssub.s32 4096, 4096
          %3034 = vsyncadd %s3024, %s3033
          %s3035 = smul.addr %s3031, 64
          %s3036 = scalar_lea.hbm %s5, %s3035
          %s3037 = sshll.u32 %s3027, 4
          %s3038 = int_to_ptr.vmem [resolvable:$true] %s3037
          %3043 = dma.vmem_to_hbm [thread:$0]  %s3038, 4096, %s3036, %s3024, 64, 64, 4
        $region68: #{tpu_custom_call.1} parent=35 // pred_fallthru
          _
      $region36: #{tpu_custom_call.1} parent=5 // pred_fallthru
        _
      %p3044 = scmp.le.s32.totalorder 2, %s25
      // Predicated region
      $region69: #{tpu_custom_call.1} parent=5 // pred_check
        %p3045 = pneg %p3044
      $region70: #{tpu_custom_call.1} parent=5 // pred_check_branch
        %3047 = sbr.rel (%p3045) target = $region72
      $region71: #{tpu_custom_call.1} parent=5 // pred_region
        %s3048 = ssub.s32 %s25, 2
        // Predicated region
        $region73: #{tpu_custom_call.1} parent=71 // pred_check
          %p3049 = pneg %p162
        $region74: #{tpu_custom_call.1} parent=71 // pred_check_branch
          %3051 = sbr.rel (%p3049) target = $region76
        $region75: #{tpu_custom_call.1} parent=71 // pred_region
          %s3052 = sand.u32 %s147, 1
          %s3053 = scalar_lea.sflag [#allocation7], %s3052
          %s3054 = sand.u32 %s147, 1
          %s3055 = smul.addr %s3054, 256
          %s3056 = scalar_lea.vmem [#allocation13], %s3055
          %3057 = dma.done %s3053, 4096
        $region76: #{tpu_custom_call.1} parent=71 // pred_fallthru
          _
      $region72: #{tpu_custom_call.1} parent=5 // pred_fallthru
        _
    $region6: #{tpu_custom_call.1} parent=1 // loop_footer
      %s29 = sadd.s32 1, %s25
    $region7: #{tpu_custom_call.1} parent=1 // loop_footer_branch
      %24 = sbr.rel target = $region3
    $region8: #{tpu_custom_call.1} parent=1 // loop_exit
      _
    %3058 = vsyncpa [#allocation6], 1
    %s3059 = scalar_lea.sflag [#allocation6], 1
    %3060 = vsyncpa %s3059, 1
    %3061 = vsyncpa [#allocation9], 1
    %s3062 = scalar_lea.sflag [#allocation9], 1
    %3063 = vsyncpa %s3062, 1
    %3064 = vsyncpa [#allocation12], 1
    %3065 = vsyncpa [#allocation7], 1
    %s3066 = scalar_lea.sflag [#allocation7], 1
    %3067 = vsyncpa %s3066, 1

</llo_original>
